<compile_context>
chip_gen: v7x
topology: tpu7x:2x2x1
jax: 0.10.0
libtpu: 0.0.40
codegen_flags: <defaults>
</compile_context>

<pallas_src>
import functools

import jax
import jax.numpy as jnp
import numpy as np
from jax.experimental import pallas as pl
from jax.experimental.pallas import tpu as pltpu

NEG_SLOPE = 0.01  # nn.LeakyReLU default negative_slope
BN_EPS = 1e-5
LANE = 128


def _round_up(x, m):
    return ((x + m - 1) // m) * m


# ----------------------------- Pallas kernels -------------------------------
def _deconv4_kernel(x_ref, w_ref, s_ref, b_ref, o_ref, slab_ref, *, cin, wp1, l1out):
    """4-phase ConvTranspose2d(k=4,s=2,p=1) + folded BN + LeakyReLU.

    x_ref:    (1, Cin, L1in)  flat padded low-res input
    w_ref:    (2, 2, Ch, 4*Cin) per-phase weights, K-order = (dh, dw, ci)
    s_ref/b_ref: (Ch, 1) folded BN scale / bias
    o_ref:    (1, 2, 2, Ch, L1out) phase-separated output
    slab_ref: VMEM scratch (4*Cin, L1out) im2col slab
    """
    for ph in range(2):
        for pw in range(2):
            row = 0
            for dh in range(2):
                for dw in range(2):
                    start = (ph + dh) * wp1 + (pw + dw)
                    slab_ref[row:row + cin, :] = x_ref[0, :, start:start + l1out]
                    row += cin
            acc = jnp.dot(w_ref[ph, pw], slab_ref[...],
                          preferred_element_type=jnp.float32)      # (Ch, L1out)
            y = acc * s_ref[...] + b_ref[...]                       # BN (folded)
            o_ref[0, ph, pw] = jnp.where(y >= 0.0, y, NEG_SLOPE * y).astype(o_ref.dtype)


def _conv3x3_concat_kernel(up_ref, high_ref, w_ref, s_ref, b_ref, o_ref, slab_ref,
                           *, ch, w2p, l2out):
    """3x3 'same' conv on concat([up, high], C) + folded BN + LeakyReLU.

    up_ref/high_ref: (1, Ch, L2in)  flat padded inputs (concat fused here)
    w_ref:  (2*Ch, 2*9*Ch) weights, K-order = (source, kh, kw, ci)
    s_ref/b_ref: (2*Ch, 1)
    o_ref:  (1, 2*Ch, L2out)
    slab_ref: VMEM scratch (2*9*Ch, L2out)
    """
    row = 0
    for src_ref in (up_ref, high_ref):
        for kh in range(3):
            for kw in range(3):
                start = kh * w2p + kw
                slab_ref[row:row + ch, :] = src_ref[0, :, start:start + l2out]
                row += ch
    acc = jnp.dot(w_ref[...], slab_ref[...], preferred_element_type=jnp.float32)
    y = acc * s_ref[...] + b_ref[...]
    o_ref[0] = jnp.where(y >= 0.0, y, NEG_SLOPE * y).astype(o_ref.dtype)


def deconv4_bn_lrelu(xf, w_phase, scale, bias, *, wp1, l1out):
    n, cin, l1in = xf.shape
    _, _, ch, k = w_phase.shape
    kern = functools.partial(_deconv4_kernel, cin=cin, wp1=wp1, l1out=l1out)
    return pl.pallas_call(
        kern,
        out_shape=jax.ShapeDtypeStruct((n, 2, 2, ch, l1out), jnp.float32),
        grid=(n,),
        in_specs=[
            pl.BlockSpec((1, cin, l1in), lambda i: (i, 0, 0)),
            pl.BlockSpec((2, 2, ch, k), lambda i: (0, 0, 0, 0)),
            pl.BlockSpec((ch, 1), lambda i: (0, 0)),
            pl.BlockSpec((ch, 1), lambda i: (0, 0)),
        ],
        out_specs=pl.BlockSpec((1, 2, 2, ch, l1out), lambda i: (i, 0, 0, 0, 0)),
        scratch_shapes=[pltpu.VMEM((k, l1out), jnp.float32)],
        compiler_params=pltpu.CompilerParams(dimension_semantics=("parallel",)),
    )(xf, w_phase, scale, bias)


def conv3x3_concat_bn_lrelu(upf, highf, w2f, scale, bias, *, w2p, l2out):
    n, ch, l2in = upf.shape
    cout, k = w2f.shape
    kern = functools.partial(_conv3x3_concat_kernel, ch=ch, w2p=w2p, l2out=l2out)
    return pl.pallas_call(
        kern,
        out_shape=jax.ShapeDtypeStruct((n, cout, l2out), jnp.float32),
        grid=(n,),
        in_specs=[
            pl.BlockSpec((1, ch, l2in), lambda i: (i, 0, 0)),
            pl.BlockSpec((1, ch, l2in), lambda i: (i, 0, 0)),
            pl.BlockSpec((cout, k), lambda i: (0, 0)),
            pl.BlockSpec((cout, 1), lambda i: (0, 0)),
            pl.BlockSpec((cout, 1), lambda i: (0, 0)),
        ],
        out_specs=pl.BlockSpec((1, cout, l2out), lambda i: (i, 0, 0)),
        scratch_shapes=[pltpu.VMEM((k, l2out), jnp.float32)],
        compiler_params=pltpu.CompilerParams(dimension_semantics=("parallel",)),
    )(upf, highf, w2f, scale, bias)


# ------------------------------ JAX glue ------------------------------------
def _pad_flatten(x, pad, total_len):
    """Pad spatially by `pad`, flatten H*W row-major, zero-tail-pad to total_len."""
    n, c, h, w = x.shape
    xp = jnp.pad(x, ((0, 0), (0, 0), (pad, pad), (pad, pad)))
    xf = xp.reshape(n, c, (h + 2 * pad) * (w + 2 * pad))
    return jnp.pad(xf, ((0, 0), (0, 0), (0, total_len - xf.shape[-1])))


def fpn_layer_forward(low, high, kp):
    """FPNLayer.forward. low: (N, C_low, H, W), high: (N, C_high, 2H, 2W), NCHW."""
    n, _, h, w = low.shape
    ch = high.shape[1]

    # ---- conv1: transposed conv via 4-phase decomposition + BN + LeakyReLU ----
    hp1, wp1 = h + 2, w + 2
    l1out = _round_up(h * wp1, LANE)
    l1in = _round_up(max(hp1 * wp1, 2 * wp1 + 2 + l1out), LANE)
    xf = _pad_flatten(low, 1, l1in)                                  # (N, Cl, L1in)
    up_ph = deconv4_bn_lrelu(xf, kp["wA"], kp["s1"], kp["b1"],
                             wp1=wp1, l1out=l1out)                   # (N, 2, 2, Ch, L1out)

    # interleave the 4 phases -> (N, Ch, 2H, 2W)
    up = up_ph[..., : h * wp1].reshape(n, 2, 2, ch, h, wp1)[..., :w]
    up = jnp.transpose(up, (0, 3, 4, 1, 5, 2)).reshape(n, ch, 2 * h, 2 * w)

    # ---- conv2: 3x3 'same' conv on concat([up, high]) (concat fused in-kernel) ----
    h2, w2 = 2 * h, 2 * w
    w2p = w2 + 2
    l2out = _round_up(h2 * w2p, LANE)
    l2in = _round_up(max((h2 + 2) * w2p, 2 * w2p + 2 + l2out), LANE)
    upf = _pad_flatten(up, 1, l2in)
    highf = _pad_flatten(high, 1, l2in)
    outf = conv3x3_concat_bn_lrelu(upf, highf, kp["w2f"], kp["s2"], kp["b2"],
                                   w2p=w2p, l2out=l2out)             # (N, 2Ch, L2out)

    out = outf[:, :, : h2 * w2p].reshape(n, 2 * ch, h2, w2p)[:, :, :, :w2]
    return out                                                        # NCHW


# --------------------------- parameter setup --------------------------------
def make_params(chan_low, chan_high, key):
    k1, k2 = jax.random.split(key)
    # PyTorch ConvTranspose2d weight: (Cin, Cout, 4, 4)
    wt1 = 0.1 * jax.random.normal(k1, (chan_low, chan_high, 4, 4), jnp.float32)
    c2 = 2 * chan_high
    # PyTorch Conv2d weight: (Cout, Cin, 3, 3)
    w2 = 0.1 * jax.random.normal(k2, (c2, c2, 3, 3), jnp.float32)

    def bn_fold(c):
        i = jnp.arange(c, dtype=jnp.float32)
        gamma = 1.0 + 0.05 * jnp.cos(i)
        beta = 0.02 * jnp.sin(i)
        running_mean = 0.01 * i
        running_var = 1.0 + 0.1 * (i % 3)
        scale = gamma / jnp.sqrt(running_var + BN_EPS)
        bias = beta - running_mean * scale
        return scale, bias

    s1, b1 = bn_fold(chan_high)
    s2, b2 = bn_fold(c2)
    return {"wt1": wt1, "w2": w2, "s1": s1, "b1": b1, "s2": s2, "b2": b2}


def prepare_kernel_params(raw, chan_low, chan_high):
    """Repack PyTorch-convention weights into the kernel-ready GEMM layouts."""
    cin, ch = chan_low, chan_high
    wt1 = raw["wt1"]                                    # (Cin, Ch, 4, 4)

    # 4-phase weights: wA[ph, pw, co, (dh*2+dw)*Cin + ci] = wt1[ci, co, 3-ph-2dh, 3-pw-2dw]
    phase_rows = []
    for ph in range(2):
        row = []
        for pw in range(2):
            taps = []
            for dh in range(2):
                for dw in range(2):
                    taps.append(wt1[:, :, (3 - ph) - 2 * dh, (3 - pw) - 2 * dw])  # (Cin, Ch)
            wp = jnp.stack(taps, axis=0).reshape(4 * cin, ch).T                   # (Ch, 4*Cin)
            row.append(wp)
        phase_rows.append(jnp.stack(row, axis=0))
    wA = jnp.stack(phase_rows, axis=0)                  # (2, 2, Ch, 4*Cin)

    def flat_oihw(w):                                   # (Co, Ci, KH, KW) -> (Co, KH*KW*Ci)
        co, ci, kh, kw = w.shape
        return jnp.transpose(w, (0, 2, 3, 1)).reshape(co, kh * kw * ci)

    w2 = raw["w2"]                                      # (2Ch, 2Ch, 3, 3)
    w2f = jnp.concatenate([flat_oihw(w2[:, :ch]), flat_oihw(w2[:, ch:])], axis=1)  # (2Ch, 2*9*Ch)

    return {
        "wA": wA,
        "w2f": w2f,
        "s1": raw["s1"].reshape(ch, 1),
        "b1": raw["b1"].reshape(ch, 1),
        "s2": raw["s2"].reshape(2 * ch, 1),
        "b2": raw["b2"].reshape(2 * ch, 1),
    }


# ------------------------------ reference -----------------------------------
def _bn_lrelu(y, scale, bias):
    y = y * scale.reshape(1, -1, 1, 1) + bias.reshape(1, -1, 1, 1)
    return jnp.where(y >= 0, y, NEG_SLOPE * y)


def ref_forward(low, high, raw):
    # ConvTranspose2d(k=4,s=2,p=1) == dilated correlation with flipped/swapped weight.
    w1 = jnp.transpose(jnp.flip(raw["wt1"], axis=(2, 3)), (1, 0, 2, 3))  # (Ch, Cin, 4, 4)
    up = jax.lax.conv_general_dilated(
        low, w1, window_strides=(1, 1), padding=((2, 2), (2, 2)), lhs_dilation=(2, 2),
        dimension_numbers=("NCHW", "OIHW", "NCHW"), precision=jax.lax.Precision.HIGHEST)
    up = _bn_lrelu(up, raw["s1"], raw["b1"])
    feat = jnp.concatenate([up, high], axis=1)
    out = jax.lax.conv_general_dilated(
        feat, raw["w2"], window_strides=(1, 1), padding=((1, 1), (1, 1)),
        dimension_numbers=("NCHW", "OIHW", "NCHW"), precision=jax.lax.Precision.HIGHEST)
    return _bn_lrelu(out, raw["s2"], raw["b2"])


# --------------------------------- main --------------------------------------
if __name__ == "__main__":
    N = 2
    chan_low, chan_high = 8, 4
    H = W = 8  # low-resolution spatial; `high` is 2H x 2W

    key = jax.random.PRNGKey(0)
    k_low, k_high, k_param = jax.random.split(key, 3)
    low = jax.random.normal(k_low, (N, chan_low, H, W), jnp.float32)          # NCHW
    high = jax.random.normal(k_high, (N, chan_high, 2 * H, 2 * W), jnp.float32)

    raw = make_params(chan_low, chan_high, k_param)
    kp = prepare_kernel_params(raw, chan_low, chan_high)

    out = jax.block_until_ready(jax.jit(fpn_layer_forward)(low, high, kp))
    assert out.shape == (N, 2 * chan_high, 2 * H, 2 * W), out.shape

    ref = jax.block_until_ready(ref_forward(low, high, raw))
    np.testing.assert_allclose(np.asarray(out), np.asarray(ref), rtol=1e-4, atol=1e-4)

    print("KERNEL_OK")
</pallas_src>

<mosaic_0001>
module attributes {stable_mosaic.version = 11 : i64} {
  func.func @_deconv4_kernel(%arg0: i32, %arg1: memref<1x8x256xf32, #tpu.memory_space<vmem>>, %arg2: memref<2x2x4x32xf32, #tpu.memory_space<vmem>>, %arg3: memref<4x1xf32, #tpu.memory_space<vmem>>, %arg4: memref<4x1xf32, #tpu.memory_space<vmem>>, %arg5: memref<1x2x2x4x128xf32, #tpu.memory_space<vmem>>, %arg6: memref<32x128xf32, #tpu.memory_space<vmem>>) attributes {dimension_semantics = [#tpu.dimension_semantics<parallel>], iteration_bounds = array<i64: 2>, scalar_prefetch = 0 : i64, scratch_operands = 1 : i64, tpu.core_type = #tpu.core_type<tc>, window_params = [{transform_indices = @transform_0, window_bounds = array<i64: 1, 8, 256>}, {pipeline_mode = #tpu.pipeline_mode<synchronous>, transform_indices = @transform_1, window_bounds = array<i64: 2, 2, 4, 32>}, {pipeline_mode = #tpu.pipeline_mode<synchronous>, transform_indices = @transform_2, window_bounds = array<i64: 4, 1>}, {pipeline_mode = #tpu.pipeline_mode<synchronous>, transform_indices = @transform_3, window_bounds = array<i64: 4, 1>}, {transform_indices = @transform_4, window_bounds = array<i64: 1, 2, 2, 4, 128>}]} {
    %c0 = arith.constant 0 : index
    %c0_0 = arith.constant 0 : index
    %c0_1 = arith.constant 0 : index
    %0 = vector.load %arg1[%c0, %c0_0, %c0_1] : memref<1x8x256xf32, #tpu.memory_space<vmem>>, vector<1x8x128xf32>
    %1 = vector.shape_cast %0 : vector<1x8x128xf32> to vector<8x128xf32>
    %c0_2 = arith.constant 0 : index
    %c0_3 = arith.constant 0 : index
    %2 = vector.load %arg6[%c0_2, %c0_3] : memref<32x128xf32, #tpu.memory_space<vmem>>, vector<8x128xf32>
    tpu.vector_store %arg6[%c0_2, %c0_3], %1 {strides = array<i32>} : memref<32x128xf32, #tpu.memory_space<vmem>>, vector<8x128xf32>,
    %c0_4 = arith.constant 0 : index
    %c0_5 = arith.constant 0 : index
    %c1 = arith.constant 1 : index
    %3 = vector.load %arg1[%c0_4, %c0_5, %c1] : memref<1x8x256xf32, #tpu.memory_space<vmem>>, vector<1x8x128xf32>
    %4 = vector.shape_cast %3 : vector<1x8x128xf32> to vector<8x128xf32>
    %c8 = arith.constant 8 : index
    %c0_6 = arith.constant 0 : index
    %5 = vector.load %arg6[%c8, %c0_6] : memref<32x128xf32, #tpu.memory_space<vmem>>, vector<8x128xf32>
    tpu.vector_store %arg6[%c8, %c0_6], %4 {strides = array<i32>} : memref<32x128xf32, #tpu.memory_space<vmem>>, vector<8x128xf32>,
    %c0_7 = arith.constant 0 : index
    %c0_8 = arith.constant 0 : index
    %c10 = arith.constant 10 : index
    %6 = vector.load %arg1[%c0_7, %c0_8, %c10] : memref<1x8x256xf32, #tpu.memory_space<vmem>>, vector<1x8x128xf32>
    %7 = vector.shape_cast %6 : vector<1x8x128xf32> to vector<8x128xf32>
    %c16 = arith.constant 16 : index
    %c0_9 = arith.constant 0 : index
    %8 = vector.load %arg6[%c16, %c0_9] : memref<32x128xf32, #tpu.memory_space<vmem>>, vector<8x128xf32>
    tpu.vector_store %arg6[%c16, %c0_9], %7 {strides = array<i32>} : memref<32x128xf32, #tpu.memory_space<vmem>>, vector<8x128xf32>,
    %c0_10 = arith.constant 0 : index
    %c0_11 = arith.constant 0 : index
    %c11 = arith.constant 11 : index
    %9 = vector.load %arg1[%c0_10, %c0_11, %c11] : memref<1x8x256xf32, #tpu.memory_space<vmem>>, vector<1x8x128xf32>
    %10 = vector.shape_cast %9 : vector<1x8x128xf32> to vector<8x128xf32>
    %c24 = arith.constant 24 : index
    %c0_12 = arith.constant 0 : index
    %11 = vector.load %arg6[%c24, %c0_12] : memref<32x128xf32, #tpu.memory_space<vmem>>, vector<8x128xf32>
    tpu.vector_store %arg6[%c24, %c0_12], %10 {strides = array<i32>} : memref<32x128xf32, #tpu.memory_space<vmem>>, vector<8x128xf32>,
    %c0_13 = arith.constant 0 : index
    %c0_14 = arith.constant 0 : index
    %c0_15 = arith.constant 0 : index
    %c0_16 = arith.constant 0 : index
    %12 = vector.load %arg2[%c0_13, %c0_14, %c0_15, %c0_16] : memref<2x2x4x32xf32, #tpu.memory_space<vmem>>, vector<1x1x4x32xf32>
    %13 = vector.shape_cast %12 : vector<1x1x4x32xf32> to vector<4x32xf32>
    %c0_17 = arith.constant 0 : index
    %c0_18 = arith.constant 0 : index
    %14 = vector.load %arg6[%c0_17, %c0_18] : memref<32x128xf32, #tpu.memory_space<vmem>>, vector<32x128xf32>
    %cst = arith.constant dense<0.000000e+00> : vector<4x128xf32>
    %15 = tpu.matmul %13, %14, %cst {dimension_numbers = #tpu.dot_dimension_numbers<[1], [0], [0], [1], [0, 0, 1, 1], [], []>} : vector<4x32xf32>, vector<32x128xf32>, vector<4x128xf32> -> vector<4x128xf32>
    %c0_19 = arith.constant 0 : index
    %c0_20 = arith.constant 0 : index
    %16 = vector.load %arg3[%c0_19, %c0_20] : memref<4x1xf32, #tpu.memory_space<vmem>>, vector<4x1xf32>
    %17 = vector.broadcast %16 : vector<4x1xf32> to vector<4x128xf32>
    %18 = arith.mulf %15, %17 : vector<4x128xf32>
    %c0_21 = arith.constant 0 : index
    %c0_22 = arith.constant 0 : index
    %19 = vector.load %arg4[%c0_21, %c0_22] : memref<4x1xf32, #tpu.memory_space<vmem>>, vector<4x1xf32>
    %20 = vector.broadcast %19 : vector<4x1xf32> to vector<4x128xf32>
    %21 = arith.addf %18, %20 : vector<4x128xf32>
    %cst_23 = arith.constant 0.000000e+00 : f32
    %22 = vector.broadcast %cst_23 : f32 to vector<4x128xf32>
    %23 = arith.cmpf oge, %21, %22 : vector<4x128xf32>
    %cst_24 = arith.constant 0.00999999977 : f32
    %24 = vector.broadcast %cst_24 : f32 to vector<4x128xf32>
    %25 = arith.mulf %24, %21 : vector<4x128xf32>
    %26 = arith.select %23, %21, %25 : vector<4x128xi1>, vector<4x128xf32>
    %c0_25 = arith.constant 0 : index
    %c0_26 = arith.constant 0 : index
    %c0_27 = arith.constant 0 : index
    %c0_28 = arith.constant 0 : index
    %c0_29 = arith.constant 0 : index
    %27 = vector.load %arg5[%c0_25, %c0_26, %c0_27, %c0_28, %c0_29] : memref<1x2x2x4x128xf32, #tpu.memory_space<vmem>>, vector<1x1x1x4x128xf32>
    %28 = vector.shape_cast %27 : vector<1x1x1x4x128xf32> to vector<4x128xf32>
    %29 = vector.shape_cast %26 : vector<4x128xf32> to vector<1x1x1x4x128xf32>
    tpu.vector_store %arg5[%c0_25, %c0_26, %c0_27, %c0_28, %c0_29], %29 {strides = array<i32>} : memref<1x2x2x4x128xf32, #tpu.memory_space<vmem>>, vector<1x1x1x4x128xf32>,
    %c0_30 = arith.constant 0 : index
    %c0_31 = arith.constant 0 : index
    %c1_32 = arith.constant 1 : index
    %30 = vector.load %arg1[%c0_30, %c0_31, %c1_32] : memref<1x8x256xf32, #tpu.memory_space<vmem>>, vector<1x8x128xf32>
    %31 = vector.shape_cast %30 : vector<1x8x128xf32> to vector<8x128xf32>
    %c0_33 = arith.constant 0 : index
    %c0_34 = arith.constant 0 : index
    %32 = vector.load %arg6[%c0_33, %c0_34] : memref<32x128xf32, #tpu.memory_space<vmem>>, vector<8x128xf32>
    tpu.vector_store %arg6[%c0_33, %c0_34], %31 {strides = array<i32>} : memref<32x128xf32, #tpu.memory_space<vmem>>, vector<8x128xf32>,
    %c0_35 = arith.constant 0 : index
    %c0_36 = arith.constant 0 : index
    %c2 = arith.constant 2 : index
    %33 = vector.load %arg1[%c0_35, %c0_36, %c2] : memref<1x8x256xf32, #tpu.memory_space<vmem>>, vector<1x8x128xf32>
    %34 = vector.shape_cast %33 : vector<1x8x128xf32> to vector<8x128xf32>
    %c8_37 = arith.constant 8 : index
    %c0_38 = arith.constant 0 : index
    %35 = vector.load %arg6[%c8_37, %c0_38] : memref<32x128xf32, #tpu.memory_space<vmem>>, vector<8x128xf32>
    tpu.vector_store %arg6[%c8_37, %c0_38], %34 {strides = array<i32>} : memref<32x128xf32, #tpu.memory_space<vmem>>, vector<8x128xf32>,
    %c0_39 = arith.constant 0 : index
    %c0_40 = arith.constant 0 : index
    %c11_41 = arith.constant 11 : index
    %36 = vector.load %arg1[%c0_39, %c0_40, %c11_41] : memref<1x8x256xf32, #tpu.memory_space<vmem>>, vector<1x8x128xf32>
    %37 = vector.shape_cast %36 : vector<1x8x128xf32> to vector<8x128xf32>
    %c16_42 = arith.constant 16 : index
    %c0_43 = arith.constant 0 : index
    %38 = vector.load %arg6[%c16_42, %c0_43] : memref<32x128xf32, #tpu.memory_space<vmem>>, vector<8x128xf32>
    tpu.vector_store %arg6[%c16_42, %c0_43], %37 {strides = array<i32>} : memref<32x128xf32, #tpu.memory_space<vmem>>, vector<8x128xf32>,
    %c0_44 = arith.constant 0 : index
    %c0_45 = arith.constant 0 : index
    %c12 = arith.constant 12 : index
    %39 = vector.load %arg1[%c0_44, %c0_45, %c12] : memref<1x8x256xf32, #tpu.memory_space<vmem>>, vector<1x8x128xf32>
    %40 = vector.shape_cast %39 : vector<1x8x128xf32> to vector<8x128xf32>
    %c24_46 = arith.constant 24 : index
    %c0_47 = arith.constant 0 : index
    %41 = vector.load %arg6[%c24_46, %c0_47] : memref<32x128xf32, #tpu.memory_space<vmem>>, vector<8x128xf32>
    tpu.vector_store %arg6[%c24_46, %c0_47], %40 {strides = array<i32>} : memref<32x128xf32, #tpu.memory_space<vmem>>, vector<8x128xf32>,
    %c0_48 = arith.constant 0 : index
    %c1_49 = arith.constant 1 : index
    %c0_50 = arith.constant 0 : index
    %c0_51 = arith.constant 0 : index
    %42 = vector.load %arg2[%c0_48, %c1_49, %c0_50, %c0_51] : memref<2x2x4x32xf32, #tpu.memory_space<vmem>>, vector<1x1x4x32xf32>
    %43 = vector.shape_cast %42 : vector<1x1x4x32xf32> to vector<4x32xf32>
    %c0_52 = arith.constant 0 : index
    %c0_53 = arith.constant 0 : index
    %44 = vector.load %arg6[%c0_52, %c0_53] : memref<32x128xf32, #tpu.memory_space<vmem>>, vector<32x128xf32>
    %cst_54 = arith.constant dense<0.000000e+00> : vector<4x128xf32>
    %45 = tpu.matmul %43, %44, %cst_54 {dimension_numbers = #tpu.dot_dimension_numbers<[1], [0], [0], [1], [0, 0, 1, 1], [], []>} : vector<4x32xf32>, vector<32x128xf32>, vector<4x128xf32> -> vector<4x128xf32>
    %c0_55 = arith.constant 0 : index
    %c0_56 = arith.constant 0 : index
    %46 = vector.load %arg3[%c0_55, %c0_56] : memref<4x1xf32, #tpu.memory_space<vmem>>, vector<4x1xf32>
    %47 = vector.broadcast %46 : vector<4x1xf32> to vector<4x128xf32>
    %48 = arith.mulf %45, %47 : vector<4x128xf32>
    %c0_57 = arith.constant 0 : index
    %c0_58 = arith.constant 0 : index
    %49 = vector.load %arg4[%c0_57, %c0_58] : memref<4x1xf32, #tpu.memory_space<vmem>>, vector<4x1xf32>
    %50 = vector.broadcast %49 : vector<4x1xf32> to vector<4x128xf32>
    %51 = arith.addf %48, %50 : vector<4x128xf32>
    %cst_59 = arith.constant 0.000000e+00 : f32
    %52 = vector.broadcast %cst_59 : f32 to vector<4x128xf32>
    %53 = arith.cmpf oge, %51, %52 : vector<4x128xf32>
    %cst_60 = arith.constant 0.00999999977 : f32
    %54 = vector.broadcast %cst_60 : f32 to vector<4x128xf32>
    %55 = arith.mulf %54, %51 : vector<4x128xf32>
    %56 = arith.select %53, %51, %55 : vector<4x128xi1>, vector<4x128xf32>
    %c0_61 = arith.constant 0 : index
    %c0_62 = arith.constant 0 : index
    %c1_63 = arith.constant 1 : index
    %c0_64 = arith.constant 0 : index
    %c0_65 = arith.constant 0 : index
    %57 = vector.load %arg5[%c0_61, %c0_62, %c1_63, %c0_64, %c0_65] : memref<1x2x2x4x128xf32, #tpu.memory_space<vmem>>, vector<1x1x1x4x128xf32>
    %58 = vector.shape_cast %57 : vector<1x1x1x4x128xf32> to vector<4x128xf32>
    %59 = vector.shape_cast %56 : vector<4x128xf32> to vector<1x1x1x4x128xf32>
    tpu.vector_store %arg5[%c0_61, %c0_62, %c1_63, %c0_64, %c0_65], %59 {strides = array<i32>} : memref<1x2x2x4x128xf32, #tpu.memory_space<vmem>>, vector<1x1x1x4x128xf32>,
    %c0_66 = arith.constant 0 : index
    %c0_67 = arith.constant 0 : index
    %c10_68 = arith.constant 10 : index
    %60 = vector.load %arg1[%c0_66, %c0_67, %c10_68] : memref<1x8x256xf32, #tpu.memory_space<vmem>>, vector<1x8x128xf32>
    %61 = vector.shape_cast %60 : vector<1x8x128xf32> to vector<8x128xf32>
    %c0_69 = arith.constant 0 : index
    %c0_70 = arith.constant 0 : index
    %62 = vector.load %arg6[%c0_69, %c0_70] : memref<32x128xf32, #tpu.memory_space<vmem>>, vector<8x128xf32>
    tpu.vector_store %arg6[%c0_69, %c0_70], %61 {strides = array<i32>} : memref<32x128xf32, #tpu.memory_space<vmem>>, vector<8x128xf32>,
    %c0_71 = arith.constant 0 : index
    %c0_72 = arith.constant 0 : index
    %c11_73 = arith.constant 11 : index
    %63 = vector.load %arg1[%c0_71, %c0_72, %c11_73] : memref<1x8x256xf32, #tpu.memory_space<vmem>>, vector<1x8x128xf32>
    %64 = vector.shape_cast %63 : vector<1x8x128xf32> to vector<8x128xf32>
    %c8_74 = arith.constant 8 : index
    %c0_75 = arith.constant 0 : index
    %65 = vector.load %arg6[%c8_74, %c0_75] : memref<32x128xf32, #tpu.memory_space<vmem>>, vector<8x128xf32>
    tpu.vector_store %arg6[%c8_74, %c0_75], %64 {strides = array<i32>} : memref<32x128xf32, #tpu.memory_space<vmem>>, vector<8x128xf32>,
    %c0_76 = arith.constant 0 : index
    %c0_77 = arith.constant 0 : index
    %c20 = arith.constant 20 : index
    %66 = vector.load %arg1[%c0_76, %c0_77, %c20] : memref<1x8x256xf32, #tpu.memory_space<vmem>>, vector<1x8x128xf32>
    %67 = vector.shape_cast %66 : vector<1x8x128xf32> to vector<8x128xf32>
    %c16_78 = arith.constant 16 : index
    %c0_79 = arith.constant 0 : index
    %68 = vector.load %arg6[%c16_78, %c0_79] : memref<32x128xf32, #tpu.memory_space<vmem>>, vector<8x128xf32>
    tpu.vector_store %arg6[%c16_78, %c0_79], %67 {strides = array<i32>} : memref<32x128xf32, #tpu.memory_space<vmem>>, vector<8x128xf32>,
    %c0_80 = arith.constant 0 : index
    %c0_81 = arith.constant 0 : index
    %c21 = arith.constant 21 : index
    %69 = vector.load %arg1[%c0_80, %c0_81, %c21] : memref<1x8x256xf32, #tpu.memory_space<vmem>>, vector<1x8x128xf32>
    %70 = vector.shape_cast %69 : vector<1x8x128xf32> to vector<8x128xf32>
    %c24_82 = arith.constant 24 : index
    %c0_83 = arith.constant 0 : index
    %71 = vector.load %arg6[%c24_82, %c0_83] : memref<32x128xf32, #tpu.memory_space<vmem>>, vector<8x128xf32>
    tpu.vector_store %arg6[%c24_82, %c0_83], %70 {strides = array<i32>} : memref<32x128xf32, #tpu.memory_space<vmem>>, vector<8x128xf32>,
    %c1_84 = arith.constant 1 : index
    %c0_85 = arith.constant 0 : index
    %c0_86 = arith.constant 0 : index
    %c0_87 = arith.constant 0 : index
    %72 = vector.load %arg2[%c1_84, %c0_85, %c0_86, %c0_87] : memref<2x2x4x32xf32, #tpu.memory_space<vmem>>, vector<1x1x4x32xf32>
    %73 = vector.shape_cast %72 : vector<1x1x4x32xf32> to vector<4x32xf32>
    %c0_88 = arith.constant 0 : index
    %c0_89 = arith.constant 0 : index
    %74 = vector.load %arg6[%c0_88, %c0_89] : memref<32x128xf32, #tpu.memory_space<vmem>>, vector<32x128xf32>
    %cst_90 = arith.constant dense<0.000000e+00> : vector<4x128xf32>
    %75 = tpu.matmul %73, %74, %cst_90 {dimension_numbers = #tpu.dot_dimension_numbers<[1], [0], [0], [1], [0, 0, 1, 1], [], []>} : vector<4x32xf32>, vector<32x128xf32>, vector<4x128xf32> -> vector<4x128xf32>
    %c0_91 = arith.constant 0 : index
    %c0_92 = arith.constant 0 : index
    %76 = vector.load %arg3[%c0_91, %c0_92] : memref<4x1xf32, #tpu.memory_space<vmem>>, vector<4x1xf32>
    %77 = vector.broadcast %76 : vector<4x1xf32> to vector<4x128xf32>
    %78 = arith.mulf %75, %77 : vector<4x128xf32>
    %c0_93 = arith.constant 0 : index
    %c0_94 = arith.constant 0 : index
    %79 = vector.load %arg4[%c0_93, %c0_94] : memref<4x1xf32, #tpu.memory_space<vmem>>, vector<4x1xf32>
    %80 = vector.broadcast %79 : vector<4x1xf32> to vector<4x128xf32>
    %81 = arith.addf %78, %80 : vector<4x128xf32>
    %cst_95 = arith.constant 0.000000e+00 : f32
    %82 = vector.broadcast %cst_95 : f32 to vector<4x128xf32>
    %83 = arith.cmpf oge, %81, %82 : vector<4x128xf32>
    %cst_96 = arith.constant 0.00999999977 : f32
    %84 = vector.broadcast %cst_96 : f32 to vector<4x128xf32>
    %85 = arith.mulf %84, %81 : vector<4x128xf32>
    %86 = arith.select %83, %81, %85 : vector<4x128xi1>, vector<4x128xf32>
    %c0_97 = arith.constant 0 : index
    %c1_98 = arith.constant 1 : index
    %c0_99 = arith.constant 0 : index
    %c0_100 = arith.constant 0 : index
    %c0_101 = arith.constant 0 : index
    %87 = vector.load %arg5[%c0_97, %c1_98, %c0_99, %c0_100, %c0_101] : memref<1x2x2x4x128xf32, #tpu.memory_space<vmem>>, vector<1x1x1x4x128xf32>
    %88 = vector.shape_cast %87 : vector<1x1x1x4x128xf32> to vector<4x128xf32>
    %89 = vector.shape_cast %86 : vector<4x128xf32> to vector<1x1x1x4x128xf32>
    tpu.vector_store %arg5[%c0_97, %c1_98, %c0_99, %c0_100, %c0_101], %89 {strides = array<i32>} : memref<1x2x2x4x128xf32, #tpu.memory_space<vmem>>, vector<1x1x1x4x128xf32>,
    %c0_102 = arith.constant 0 : index
    %c0_103 = arith.constant 0 : index
    %c11_104 = arith.constant 11 : index
    %90 = vector.load %arg1[%c0_102, %c0_103, %c11_104] : memref<1x8x256xf32, #tpu.memory_space<vmem>>, vector<1x8x128xf32>
    %91 = vector.shape_cast %90 : vector<1x8x128xf32> to vector<8x128xf32>
    %c0_105 = arith.constant 0 : index
    %c0_106 = arith.constant 0 : index
    %92 = vector.load %arg6[%c0_105, %c0_106] : memref<32x128xf32, #tpu.memory_space<vmem>>, vector<8x128xf32>
    tpu.vector_store %arg6[%c0_105, %c0_106], %91 {strides = array<i32>} : memref<32x128xf32, #tpu.memory_space<vmem>>, vector<8x128xf32>,
    %c0_107 = arith.constant 0 : index
    %c0_108 = arith.constant 0 : index
    %c12_109 = arith.constant 12 : index
    %93 = vector.load %arg1[%c0_107, %c0_108, %c12_109] : memref<1x8x256xf32, #tpu.memory_space<vmem>>, vector<1x8x128xf32>
    %94 = vector.shape_cast %93 : vector<1x8x128xf32> to vector<8x128xf32>
    %c8_110 = arith.constant 8 : index
    %c0_111 = arith.constant 0 : index
    %95 = vector.load %arg6[%c8_110, %c0_111] : memref<32x128xf32, #tpu.memory_space<vmem>>, vector<8x128xf32>
    tpu.vector_store %arg6[%c8_110, %c0_111], %94 {strides = array<i32>} : memref<32x128xf32, #tpu.memory_space<vmem>>, vector<8x128xf32>,
    %c0_112 = arith.constant 0 : index
    %c0_113 = arith.constant 0 : index
    %c21_114 = arith.constant 21 : index
    %96 = vector.load %arg1[%c0_112, %c0_113, %c21_114] : memref<1x8x256xf32, #tpu.memory_space<vmem>>, vector<1x8x128xf32>
    %97 = vector.shape_cast %96 : vector<1x8x128xf32> to vector<8x128xf32>
    %c16_115 = arith.constant 16 : index
    %c0_116 = arith.constant 0 : index
    %98 = vector.load %arg6[%c16_115, %c0_116] : memref<32x128xf32, #tpu.memory_space<vmem>>, vector<8x128xf32>
    tpu.vector_store %arg6[%c16_115, %c0_116], %97 {strides = array<i32>} : memref<32x128xf32, #tpu.memory_space<vmem>>, vector<8x128xf32>,
    %c0_117 = arith.constant 0 : index
    %c0_118 = arith.constant 0 : index
    %c22 = arith.constant 22 : index
    %99 = vector.load %arg1[%c0_117, %c0_118, %c22] : memref<1x8x256xf32, #tpu.memory_space<vmem>>, vector<1x8x128xf32>
    %100 = vector.shape_cast %99 : vector<1x8x128xf32> to vector<8x128xf32>
    %c24_119 = arith.constant 24 : index
    %c0_120 = arith.constant 0 : index
    %101 = vector.load %arg6[%c24_119, %c0_120] : memref<32x128xf32, #tpu.memory_space<vmem>>, vector<8x128xf32>
    tpu.vector_store %arg6[%c24_119, %c0_120], %100 {strides = array<i32>} : memref<32x128xf32, #tpu.memory_space<vmem>>, vector<8x128xf32>,
    %c1_121 = arith.constant 1 : index
    %c1_122 = arith.constant 1 : index
    %c0_123 = arith.constant 0 : index
    %c0_124 = arith.constant 0 : index
    %102 = vector.load %arg2[%c1_121, %c1_122, %c0_123, %c0_124] : memref<2x2x4x32xf32, #tpu.memory_space<vmem>>, vector<1x1x4x32xf32>
    %103 = vector.shape_cast %102 : vector<1x1x4x32xf32> to vector<4x32xf32>
    %c0_125 = arith.constant 0 : index
    %c0_126 = arith.constant 0 : index
    %104 = vector.load %arg6[%c0_125, %c0_126] : memref<32x128xf32, #tpu.memory_space<vmem>>, vector<32x128xf32>
    %cst_127 = arith.constant dense<0.000000e+00> : vector<4x128xf32>
    %105 = tpu.matmul %103, %104, %cst_127 {dimension_numbers = #tpu.dot_dimension_numbers<[1], [0], [0], [1], [0, 0, 1, 1], [], []>} : vector<4x32xf32>, vector<32x128xf32>, vector<4x128xf32> -> vector<4x128xf32>
    %c0_128 = arith.constant 0 : index
    %c0_129 = arith.constant 0 : index
    %106 = vector.load %arg3[%c0_128, %c0_129] : memref<4x1xf32, #tpu.memory_space<vmem>>, vector<4x1xf32>
    %107 = vector.broadcast %106 : vector<4x1xf32> to vector<4x128xf32>
    %108 = arith.mulf %105, %107 : vector<4x128xf32>
    %c0_130 = arith.constant 0 : index
    %c0_131 = arith.constant 0 : index
    %109 = vector.load %arg4[%c0_130, %c0_131] : memref<4x1xf32, #tpu.memory_space<vmem>>, vector<4x1xf32>
    %110 = vector.broadcast %109 : vector<4x1xf32> to vector<4x128xf32>
    %111 = arith.addf %108, %110 : vector<4x128xf32>
    %cst_132 = arith.constant 0.000000e+00 : f32
    %112 = vector.broadcast %cst_132 : f32 to vector<4x128xf32>
    %113 = arith.cmpf oge, %111, %112 : vector<4x128xf32>
    %cst_133 = arith.constant 0.00999999977 : f32
    %114 = vector.broadcast %cst_133 : f32 to vector<4x128xf32>
    %115 = arith.mulf %114, %111 : vector<4x128xf32>
    %116 = arith.select %113, %111, %115 : vector<4x128xi1>, vector<4x128xf32>
    %c0_134 = arith.constant 0 : index
    %c1_135 = arith.constant 1 : index
    %c1_136 = arith.constant 1 : index
    %c0_137 = arith.constant 0 : index
    %c0_138 = arith.constant 0 : index
    %117 = vector.load %arg5[%c0_134, %c1_135, %c1_136, %c0_137, %c0_138] : memref<1x2x2x4x128xf32, #tpu.memory_space<vmem>>, vector<1x1x1x4x128xf32>
    %118 = vector.shape_cast %117 : vector<1x1x1x4x128xf32> to vector<4x128xf32>
    %119 = vector.shape_cast %116 : vector<4x128xf32> to vector<1x1x1x4x128xf32>
    tpu.vector_store %arg5[%c0_134, %c1_135, %c1_136, %c0_137, %c0_138], %119 {strides = array<i32>} : memref<1x2x2x4x128xf32, #tpu.memory_space<vmem>>, vector<1x1x1x4x128xf32>,
    return
  }
  func.func @transform_0(%arg0: i32) -> (i32, i32, i32) {
    %c0_i32 = arith.constant 0 : i32
    %c0_i32_0 = arith.constant 0 : i32
    %c0_i32_1 = arith.constant 0 : i32
    return %arg0, %c0_i32, %c0_i32_0 : i32, i32, i32
  }
  func.func @transform_1(%arg0: i32) -> (i32, i32, i32, i32) {
    %c0_i32 = arith.constant 0 : i32
    %c0_i32_0 = arith.constant 0 : i32
    %c0_i32_1 = arith.constant 0 : i32
    %c0_i32_2 = arith.constant 0 : i32
    %c0_i32_3 = arith.constant 0 : i32
    return %c0_i32, %c0_i32_0, %c0_i32_1, %c0_i32_2 : i32, i32, i32, i32
  }
  func.func @transform_2(%arg0: i32) -> (i32, i32) {
    %c0_i32 = arith.constant 0 : i32
    %c0_i32_0 = arith.constant 0 : i32
    %c0_i32_1 = arith.constant 0 : i32
    return %c0_i32, %c0_i32_0 : i32, i32
  }
  func.func @transform_3(%arg0: i32) -> (i32, i32) {
    %c0_i32 = arith.constant 0 : i32
    %c0_i32_0 = arith.constant 0 : i32
    %c0_i32_1 = arith.constant 0 : i32
    return %c0_i32, %c0_i32_0 : i32, i32
  }
  func.func @transform_4(%arg0: i32) -> (i32, i32, i32, i32, i32) {
    %c0_i32 = arith.constant 0 : i32
    %c0_i32_0 = arith.constant 0 : i32
    %c0_i32_1 = arith.constant 0 : i32
    %c0_i32_2 = arith.constant 0 : i32
    %c0_i32_3 = arith.constant 0 : i32
    return %arg0, %c0_i32, %c0_i32_0, %c0_i32_1, %c0_i32_2 : i32, i32, i32, i32, i32
  }
}

module attributes {stable_mosaic.version = 11 : i64} {
  func.func @_conv3x3_concat_kernel(%arg0: i32, %arg1: memref<1x4x512xf32, #tpu.memory_space<vmem>>, %arg2: memref<1x4x512xf32, #tpu.memory_space<vmem>>, %arg3: memref<8x72xf32, #tpu.memory_space<vmem>>, %arg4: memref<8x1xf32, #tpu.memory_space<vmem>>, %arg5: memref<8x1xf32, #tpu.memory_space<vmem>>, %arg6: memref<1x8x384xf32, #tpu.memory_space<vmem>>, %arg7: memref<72x384xf32, #tpu.memory_space<vmem>>) attributes {dimension_semantics = [#tpu.dimension_semantics<parallel>], iteration_bounds = array<i64: 2>, scalar_prefetch = 0 : i64, scratch_operands = 1 : i64, tpu.core_type = #tpu.core_type<tc>, window_params = [{transform_indices = @transform_0, window_bounds = array<i64: 1, 4, 512>}, {transform_indices = @transform_1, window_bounds = array<i64: 1, 4, 512>}, {pipeline_mode = #tpu.pipeline_mode<synchronous>, transform_indices = @transform_2, window_bounds = array<i64: 8, 72>}, {pipeline_mode = #tpu.pipeline_mode<synchronous>, transform_indices = @transform_3, window_bounds = array<i64: 8, 1>}, {pipeline_mode = #tpu.pipeline_mode<synchronous>, transform_indices = @transform_4, window_bounds = array<i64: 8, 1>}, {transform_indices = @transform_5, window_bounds = array<i64: 1, 8, 384>}]} {
    %c0 = arith.constant 0 : index
    %c0_0 = arith.constant 0 : index
    %c0_1 = arith.constant 0 : index
    %0 = vector.load %arg1[%c0, %c0_0, %c0_1] : memref<1x4x512xf32, #tpu.memory_space<vmem>>, vector<1x4x384xf32>
    %1 = vector.shape_cast %0 : vector<1x4x384xf32> to vector<4x384xf32>
    %c0_2 = arith.constant 0 : index
    %c0_3 = arith.constant 0 : index
    %2 = vector.load %arg7[%c0_2, %c0_3] : memref<72x384xf32, #tpu.memory_space<vmem>>, vector<4x384xf32>
    tpu.vector_store %arg7[%c0_2, %c0_3], %1 {strides = array<i32>} : memref<72x384xf32, #tpu.memory_space<vmem>>, vector<4x384xf32>,
    %c0_4 = arith.constant 0 : index
    %c0_5 = arith.constant 0 : index
    %c1 = arith.constant 1 : index
    %3 = vector.load %arg1[%c0_4, %c0_5, %c1] : memref<1x4x512xf32, #tpu.memory_space<vmem>>, vector<1x4x384xf32>
    %4 = vector.shape_cast %3 : vector<1x4x384xf32> to vector<4x384xf32>
    %c4 = arith.constant 4 : index
    %c0_6 = arith.constant 0 : index
    %5 = vector.load %arg7[%c4, %c0_6] : memref<72x384xf32, #tpu.memory_space<vmem>>, vector<4x384xf32>
    tpu.vector_store %arg7[%c4, %c0_6], %4 {strides = array<i32>} : memref<72x384xf32, #tpu.memory_space<vmem>>, vector<4x384xf32>,
    %c0_7 = arith.constant 0 : index
    %c0_8 = arith.constant 0 : index
    %c2 = arith.constant 2 : index
    %6 = vector.load %arg1[%c0_7, %c0_8, %c2] : memref<1x4x512xf32, #tpu.memory_space<vmem>>, vector<1x4x384xf32>
    %7 = vector.shape_cast %6 : vector<1x4x384xf32> to vector<4x384xf32>
    %c8 = arith.constant 8 : index
    %c0_9 = arith.constant 0 : index
    %8 = vector.load %arg7[%c8, %c0_9] : memref<72x384xf32, #tpu.memory_space<vmem>>, vector<4x384xf32>
    tpu.vector_store %arg7[%c8, %c0_9], %7 {strides = array<i32>} : memref<72x384xf32, #tpu.memory_space<vmem>>, vector<4x384xf32>,
    %c0_10 = arith.constant 0 : index
    %c0_11 = arith.constant 0 : index
    %c18 = arith.constant 18 : index
    %9 = vector.load %arg1[%c0_10, %c0_11, %c18] : memref<1x4x512xf32, #tpu.memory_space<vmem>>, vector<1x4x384xf32>
    %10 = vector.shape_cast %9 : vector<1x4x384xf32> to vector<4x384xf32>
    %c12 = arith.constant 12 : index
    %c0_12 = arith.constant 0 : index
    %11 = vector.load %arg7[%c12, %c0_12] : memref<72x384xf32, #tpu.memory_space<vmem>>, vector<4x384xf32>
    tpu.vector_store %arg7[%c12, %c0_12], %10 {strides = array<i32>} : memref<72x384xf32, #tpu.memory_space<vmem>>, vector<4x384xf32>,
    %c0_13 = arith.constant 0 : index
    %c0_14 = arith.constant 0 : index
    %c19 = arith.constant 19 : index
    %12 = vector.load %arg1[%c0_13, %c0_14, %c19] : memref<1x4x512xf32, #tpu.memory_space<vmem>>, vector<1x4x384xf32>
    %13 = vector.shape_cast %12 : vector<1x4x384xf32> to vector<4x384xf32>
    %c16 = arith.constant 16 : index
    %c0_15 = arith.constant 0 : index
    %14 = vector.load %arg7[%c16, %c0_15] : memref<72x384xf32, #tpu.memory_space<vmem>>, vector<4x384xf32>
    tpu.vector_store %arg7[%c16, %c0_15], %13 {strides = array<i32>} : memref<72x384xf32, #tpu.memory_space<vmem>>, vector<4x384xf32>,
    %c0_16 = arith.constant 0 : index
    %c0_17 = arith.constant 0 : index
    %c20 = arith.constant 20 : index
    %15 = vector.load %arg1[%c0_16, %c0_17, %c20] : memref<1x4x512xf32, #tpu.memory_space<vmem>>, vector<1x4x384xf32>
    %16 = vector.shape_cast %15 : vector<1x4x384xf32> to vector<4x384xf32>
    %c20_18 = arith.constant 20 : index
    %c0_19 = arith.constant 0 : index
    %17 = vector.load %arg7[%c20_18, %c0_19] : memref<72x384xf32, #tpu.memory_space<vmem>>, vector<4x384xf32>
    tpu.vector_store %arg7[%c20_18, %c0_19], %16 {strides = array<i32>} : memref<72x384xf32, #tpu.memory_space<vmem>>, vector<4x384xf32>,
    %c0_20 = arith.constant 0 : index
    %c0_21 = arith.constant 0 : index
    %c36 = arith.constant 36 : index
    %18 = vector.load %arg1[%c0_20, %c0_21, %c36] : memref<1x4x512xf32, #tpu.memory_space<vmem>>, vector<1x4x384xf32>
    %19 = vector.shape_cast %18 : vector<1x4x384xf32> to vector<4x384xf32>
    %c24 = arith.constant 24 : index
    %c0_22 = arith.constant 0 : index
    %20 = vector.load %arg7[%c24, %c0_22] : memref<72x384xf32, #tpu.memory_space<vmem>>, vector<4x384xf32>
    tpu.vector_store %arg7[%c24, %c0_22], %19 {strides = array<i32>} : memref<72x384xf32, #tpu.memory_space<vmem>>, vector<4x384xf32>,
    %c0_23 = arith.constant 0 : index
    %c0_24 = arith.constant 0 : index
    %c37 = arith.constant 37 : index
    %21 = vector.load %arg1[%c0_23, %c0_24, %c37] : memref<1x4x512xf32, #tpu.memory_space<vmem>>, vector<1x4x384xf32>
    %22 = vector.shape_cast %21 : vector<1x4x384xf32> to vector<4x384xf32>
    %c28 = arith.constant 28 : index
    %c0_25 = arith.constant 0 : index
    %23 = vector.load %arg7[%c28, %c0_25] : memref<72x384xf32, #tpu.memory_space<vmem>>, vector<4x384xf32>
    tpu.vector_store %arg7[%c28, %c0_25], %22 {strides = array<i32>} : memref<72x384xf32, #tpu.memory_space<vmem>>, vector<4x384xf32>,
    %c0_26 = arith.constant 0 : index
    %c0_27 = arith.constant 0 : index
    %c38 = arith.constant 38 : index
    %24 = vector.load %arg1[%c0_26, %c0_27, %c38] : memref<1x4x512xf32, #tpu.memory_space<vmem>>, vector<1x4x384xf32>
    %25 = vector.shape_cast %24 : vector<1x4x384xf32> to vector<4x384xf32>
    %c32 = arith.constant 32 : index
    %c0_28 = arith.constant 0 : index
    %26 = vector.load %arg7[%c32, %c0_28] : memref<72x384xf32, #tpu.memory_space<vmem>>, vector<4x384xf32>
    tpu.vector_store %arg7[%c32, %c0_28], %25 {strides = array<i32>} : memref<72x384xf32, #tpu.memory_space<vmem>>, vector<4x384xf32>,
    %c0_29 = arith.constant 0 : index
    %c0_30 = arith.constant 0 : index
    %c0_31 = arith.constant 0 : index
    %27 = vector.load %arg2[%c0_29, %c0_30, %c0_31] : memref<1x4x512xf32, #tpu.memory_space<vmem>>, vector<1x4x384xf32>
    %28 = vector.shape_cast %27 : vector<1x4x384xf32> to vector<4x384xf32>
    %c36_32 = arith.constant 36 : index
    %c0_33 = arith.constant 0 : index
    %29 = vector.load %arg7[%c36_32, %c0_33] : memref<72x384xf32, #tpu.memory_space<vmem>>, vector<4x384xf32>
    tpu.vector_store %arg7[%c36_32, %c0_33], %28 {strides = array<i32>} : memref<72x384xf32, #tpu.memory_space<vmem>>, vector<4x384xf32>,
    %c0_34 = arith.constant 0 : index
    %c0_35 = arith.constant 0 : index
    %c1_36 = arith.constant 1 : index
    %30 = vector.load %arg2[%c0_34, %c0_35, %c1_36] : memref<1x4x512xf32, #tpu.memory_space<vmem>>, vector<1x4x384xf32>
    %31 = vector.shape_cast %30 : vector<1x4x384xf32> to vector<4x384xf32>
    %c40 = arith.constant 40 : index
    %c0_37 = arith.constant 0 : index
    %32 = vector.load %arg7[%c40, %c0_37] : memref<72x384xf32, #tpu.memory_space<vmem>>, vector<4x384xf32>
    tpu.vector_store %arg7[%c40, %c0_37], %31 {strides = array<i32>} : memref<72x384xf32, #tpu.memory_space<vmem>>, vector<4x384xf32>,
    %c0_38 = arith.constant 0 : index
    %c0_39 = arith.constant 0 : index
    %c2_40 = arith.constant 2 : index
    %33 = vector.load %arg2[%c0_38, %c0_39, %c2_40] : memref<1x4x512xf32, #tpu.memory_space<vmem>>, vector<1x4x384xf32>
    %34 = vector.shape_cast %33 : vector<1x4x384xf32> to vector<4x384xf32>
    %c44 = arith.constant 44 : index
    %c0_41 = arith.constant 0 : index
    %35 = vector.load %arg7[%c44, %c0_41] : memref<72x384xf32, #tpu.memory_space<vmem>>, vector<4x384xf32>
    tpu.vector_store %arg7[%c44, %c0_41], %34 {strides = array<i32>} : memref<72x384xf32, #tpu.memory_space<vmem>>, vector<4x384xf32>,
    %c0_42 = arith.constant 0 : index
    %c0_43 = arith.constant 0 : index
    %c18_44 = arith.constant 18 : index
    %36 = vector.load %arg2[%c0_42, %c0_43, %c18_44] : memref<1x4x512xf32, #tpu.memory_space<vmem>>, vector<1x4x384xf32>
    %37 = vector.shape_cast %36 : vector<1x4x384xf32> to vector<4x384xf32>
    %c48 = arith.constant 48 : index
    %c0_45 = arith.constant 0 : index
    %38 = vector.load %arg7[%c48, %c0_45] : memref<72x384xf32, #tpu.memory_space<vmem>>, vector<4x384xf32>
    tpu.vector_store %arg7[%c48, %c0_45], %37 {strides = array<i32>} : memref<72x384xf32, #tpu.memory_space<vmem>>, vector<4x384xf32>,
    %c0_46 = arith.constant 0 : index
    %c0_47 = arith.constant 0 : index
    %c19_48 = arith.constant 19 : index
    %39 = vector.load %arg2[%c0_46, %c0_47, %c19_48] : memref<1x4x512xf32, #tpu.memory_space<vmem>>, vector<1x4x384xf32>
    %40 = vector.shape_cast %39 : vector<1x4x384xf32> to vector<4x384xf32>
    %c52 = arith.constant 52 : index
    %c0_49 = arith.constant 0 : index
    %41 = vector.load %arg7[%c52, %c0_49] : memref<72x384xf32, #tpu.memory_space<vmem>>, vector<4x384xf32>
    tpu.vector_store %arg7[%c52, %c0_49], %40 {strides = array<i32>} : memref<72x384xf32, #tpu.memory_space<vmem>>, vector<4x384xf32>,
    %c0_50 = arith.constant 0 : index
    %c0_51 = arith.constant 0 : index
    %c20_52 = arith.constant 20 : index
    %42 = vector.load %arg2[%c0_50, %c0_51, %c20_52] : memref<1x4x512xf32, #tpu.memory_space<vmem>>, vector<1x4x384xf32>
    %43 = vector.shape_cast %42 : vector<1x4x384xf32> to vector<4x384xf32>
    %c56 = arith.constant 56 : index
    %c0_53 = arith.constant 0 : index
    %44 = vector.load %arg7[%c56, %c0_53] : memref<72x384xf32, #tpu.memory_space<vmem>>, vector<4x384xf32>
    tpu.vector_store %arg7[%c56, %c0_53], %43 {strides = array<i32>} : memref<72x384xf32, #tpu.memory_space<vmem>>, vector<4x384xf32>,
    %c0_54 = arith.constant 0 : index
    %c0_55 = arith.constant 0 : index
    %c36_56 = arith.constant 36 : index
    %45 = vector.load %arg2[%c0_54, %c0_55, %c36_56] : memref<1x4x512xf32, #tpu.memory_space<vmem>>, vector<1x4x384xf32>
    %46 = vector.shape_cast %45 : vector<1x4x384xf32> to vector<4x384xf32>
    %c60 = arith.constant 60 : index
    %c0_57 = arith.constant 0 : index
    %47 = vector.load %arg7[%c60, %c0_57] : memref<72x384xf32, #tpu.memory_space<vmem>>, vector<4x384xf32>
    tpu.vector_store %arg7[%c60, %c0_57], %46 {strides = array<i32>} : memref<72x384xf32, #tpu.memory_space<vmem>>, vector<4x384xf32>,
    %c0_58 = arith.constant 0 : index
    %c0_59 = arith.constant 0 : index
    %c37_60 = arith.constant 37 : index
    %48 = vector.load %arg2[%c0_58, %c0_59, %c37_60] : memref<1x4x512xf32, #tpu.memory_space<vmem>>, vector<1x4x384xf32>
    %49 = vector.shape_cast %48 : vector<1x4x384xf32> to vector<4x384xf32>
    %c64 = arith.constant 64 : index
    %c0_61 = arith.constant 0 : index
    %50 = vector.load %arg7[%c64, %c0_61] : memref<72x384xf32, #tpu.memory_space<vmem>>, vector<4x384xf32>
    tpu.vector_store %arg7[%c64, %c0_61], %49 {strides = array<i32>} : memref<72x384xf32, #tpu.memory_space<vmem>>, vector<4x384xf32>,
    %c0_62 = arith.constant 0 : index
    %c0_63 = arith.constant 0 : index
    %c38_64 = arith.constant 38 : index
    %51 = vector.load %arg2[%c0_62, %c0_63, %c38_64] : memref<1x4x512xf32, #tpu.memory_space<vmem>>, vector<1x4x384xf32>
    %52 = vector.shape_cast %51 : vector<1x4x384xf32> to vector<4x384xf32>
    %c68 = arith.constant 68 : index
    %c0_65 = arith.constant 0 : index
    %53 = vector.load %arg7[%c68, %c0_65] : memref<72x384xf32, #tpu.memory_space<vmem>>, vector<4x384xf32>
    tpu.vector_store %arg7[%c68, %c0_65], %52 {strides = array<i32>} : memref<72x384xf32, #tpu.memory_space<vmem>>, vector<4x384xf32>,
    %c0_66 = arith.constant 0 : index
    %c0_67 = arith.constant 0 : index
    %54 = vector.load %arg3[%c0_66, %c0_67] : memref<8x72xf32, #tpu.memory_space<vmem>>, vector<8x72xf32>
    %c0_68 = arith.constant 0 : index
    %c0_69 = arith.constant 0 : index
    %55 = vector.load %arg7[%c0_68, %c0_69] : memref<72x384xf32, #tpu.memory_space<vmem>>, vector<72x384xf32>
    %cst = arith.constant dense<0.000000e+00> : vector<8x384xf32>
    %56 = tpu.matmul %54, %55, %cst {dimension_numbers = #tpu.dot_dimension_numbers<[1], [0], [0], [1], [0, 0, 1, 1], [], []>} : vector<8x72xf32>, vector<72x384xf32>, vector<8x384xf32> -> vector<8x384xf32>
    %c0_70 = arith.constant 0 : index
    %c0_71 = arith.constant 0 : index
    %57 = vector.load %arg4[%c0_70, %c0_71] : memref<8x1xf32, #tpu.memory_space<vmem>>, vector<8x1xf32>
    %58 = vector.broadcast %57 : vector<8x1xf32> to vector<8x384xf32>
    %59 = arith.mulf %56, %58 : vector<8x384xf32>
    %c0_72 = arith.constant 0 : index
    %c0_73 = arith.constant 0 : index
    %60 = vector.load %arg5[%c0_72, %c0_73] : memref<8x1xf32, #tpu.memory_space<vmem>>, vector<8x1xf32>
    %61 = vector.broadcast %60 : vector<8x1xf32> to vector<8x384xf32>
    %62 = arith.addf %59, %61 : vector<8x384xf32>
    %cst_74 = arith.constant 0.000000e+00 : f32
    %63 = vector.broadcast %cst_74 : f32 to vector<8x384xf32>
    %64 = arith.cmpf oge, %62, %63 : vector<8x384xf32>
    %cst_75 = arith.constant 0.00999999977 : f32
    %65 = vector.broadcast %cst_75 : f32 to vector<8x384xf32>
    %66 = arith.mulf %65, %62 : vector<8x384xf32>
    %67 = arith.select %64, %62, %66 : vector<8x384xi1>, vector<8x384xf32>
    %c0_76 = arith.constant 0 : index
    %c0_77 = arith.constant 0 : index
    %c0_78 = arith.constant 0 : index
    %68 = vector.load %arg6[%c0_76, %c0_77, %c0_78] : memref<1x8x384xf32, #tpu.memory_space<vmem>>, vector<1x8x384xf32>
    %69 = vector.shape_cast %68 : vector<1x8x384xf32> to vector<8x384xf32>
    %70 = vector.shape_cast %67 : vector<8x384xf32> to vector<1x8x384xf32>
    tpu.vector_store %arg6[%c0_76, %c0_77, %c0_78], %70 {strides = array<i32>} : memref<1x8x384xf32, #tpu.memory_space<vmem>>, vector<1x8x384xf32>,
    return
  }
  func.func @transform_0(%arg0: i32) -> (i32, i32, i32) {
    %c0_i32 = arith.constant 0 : i32
    %c0_i32_0 = arith.constant 0 : i32
    %c0_i32_1 = arith.constant 0 : i32
    return %arg0, %c0_i32, %c0_i32_0 : i32, i32, i32
  }
  func.func @transform_1(%arg0: i32) -> (i32, i32, i32) {
    %c0_i32 = arith.constant 0 : i32
    %c0_i32_0 = arith.constant 0 : i32
    %c0_i32_1 = arith.constant 0 : i32
    return %arg0, %c0_i32, %c0_i32_0 : i32, i32, i32
  }
  func.func @transform_2(%arg0: i32) -> (i32, i32) {
    %c0_i32 = arith.constant 0 : i32
    %c0_i32_0 = arith.constant 0 : i32
    %c0_i32_1 = arith.constant 0 : i32
    return %c0_i32, %c0_i32_0 : i32, i32
  }
  func.func @transform_3(%arg0: i32) -> (i32, i32) {
    %c0_i32 = arith.constant 0 : i32
    %c0_i32_0 = arith.constant 0 : i32
    %c0_i32_1 = arith.constant 0 : i32
    return %c0_i32, %c0_i32_0 : i32, i32
  }
  func.func @transform_4(%arg0: i32) -> (i32, i32) {
    %c0_i32 = arith.constant 0 : i32
    %c0_i32_0 = arith.constant 0 : i32
    %c0_i32_1 = arith.constant 0 : i32
    return %c0_i32, %c0_i32_0 : i32, i32
  }
  func.func @transform_5(%arg0: i32) -> (i32, i32, i32) {
    %c0_i32 = arith.constant 0 : i32
    %c0_i32_0 = arith.constant 0 : i32
    %c0_i32_1 = arith.constant 0 : i32
    return %arg0, %c0_i32, %c0_i32_0 : i32, i32, i32
  }
}

</mosaic_0001>

<llo_original>
// kernel: fpn_layer_forward.2
$region0: #{fpn_layer_forward.2}
  #allocation0 [shape = 'u32[]', space=smem, size = 0x4, offset = 0x4, fixed_abs, tag = 'smem constant byte address 0x4 - core index']
  #allocation1 [shape = 'u32[144,128]{1,0:T(1,128)}', space=vmem, size = 0x12000, scoped, tag = 'internal scratch']
  #allocation2 [shape = 'f32[32,128]{1,0:T(8,128)}', space=vmem, size = 0x4000, scoped, tag = 'scratch operand']
  %s0 = inlined_call_operand.vmem [shape: f32[2,8,256], index: 0, kind: input, shape index: {}]
  %s1 = inlined_call_operand.vmem [shape: f32[2,2,4,32], index: 1, kind: input, shape index: {}]
  %s2 = inlined_call_operand.vmem [shape: f32[4,1], index: 2, kind: input, shape index: {}]
  %s3 = inlined_call_operand.vmem [shape: f32[4,1], index: 3, kind: input, shape index: {}]
  %s4 = inlined_call_operand.vmem [shape: f32[2,2,2,4,128], index: 4, kind: output, shape index: {}]
  %s5 = sld [smem:[#allocation0]]
  $region49: #{fpn_layer_forward.2} parent=0
    _
  %s7 = ssub.s32 1, %s5
  %s8 = scalar_select 0, %s7, %s5
  loop: start=0, step=1, limit=4
  $region2: #{fpn_layer_forward.2} parent=0 // loop_pre_header
    _
  $region3: #{fpn_layer_forward.2} parent=0 // loop_header
    %s10 = sphi 0, %s14
    %p11 = scmp.ge.s32.totalorder %s10, 4
    %s20 = sphi 0, %s22
    %s23 = sphi 0, %s20
    %s24 = sphi 0, %s23
    %s40 = sphi 0, %s24
    %s44 = sphi 0, %s44
    %s46 = sphi 0, %s44
    %s47 = sphi 0, %s46
    %s61 = sphi 0, %s47
    %s65 = sphi 0, %s65
    %s67 = sphi 0, %s65
    %s68 = sphi 0, %s67
    %s82 = sphi 0, %s68
    %s86 = sphi 0, %s86
    %s88 = sphi 0, %s86
    %s89 = sphi 0, %s88
    %s103 = sphi 0, %s89
    %s109 = sphi 0, %s111
    %s112 = sphi 0, %s109
    %s113 = sphi 0, %s112
    %s129 = sphi 0, %s113
  $region4: #{fpn_layer_forward.2} parent=0 // loop_header_branch
    %13 = sbr.rel (%p11) target = $region8
  $region5: #{fpn_layer_forward.2} parent=0 // loop_body
    %s15 = ssub.s32 %s10, 1
    %s16 = ssub.s32 %s10, 2
    %s17 = sadd.s32 %s10, 1
    %s18 = ssub.s32 %s10, %s17
    %p19 = scmp.eq.s32.totalorder %s18, 0
    %s21 = sadd.s32 %s20, 1
    %s22 = scalar_select %p19, %s20, %s21
    %p25 = pneg %p19
    %p26 = scmp.eq.s32.totalorder %s10, 1
    %p27 = por %p25, %p26
    %p28 = scmp.ne.s32.totalorder %s20, %s23
    %p29 = scmp.eq.s32.totalorder %s10, 0
    %p30 = por %p28, %p29
    %p31 = scmp.ne.s32.totalorder %s20, %s23
    %p32 = scmp.eq.s32.totalorder %s15, 1
    %p33 = por %p31, %p32
    %p34 = scmp.ne.s32.totalorder %s23, %s24
    %p35 = scmp.eq.s32.totalorder %s15, 0
    %p36 = por %p34, %p35
    %p37 = scmp.ne.s32.totalorder %s23, %s24
    %p38 = scmp.eq.s32.totalorder %s16, 1
    %p39 = por %p37, %p38
    %p41 = scmp.ne.s32.totalorder %s24, %s40
    %p42 = scmp.eq.s32.totalorder %s16, 0
    %p43 = por %p41, %p42
    %s45 = sadd.s32 %s44, 1
    %p48 = scmp.eq.s32.totalorder %s10, 1
    %p49 = scmp.ne.s32.totalorder %s44, %s46
    %p50 = scmp.eq.s32.totalorder %s10, 0
    %p51 = por %p49, %p50
    %p52 = scmp.ne.s32.totalorder %s44, %s46
    %p53 = scmp.eq.s32.totalorder %s15, 1
    %p54 = por %p52, %p53
    %p55 = scmp.ne.s32.totalorder %s46, %s47
    %p56 = scmp.eq.s32.totalorder %s15, 0
    %p57 = por %p55, %p56
    %p58 = scmp.ne.s32.totalorder %s46, %s47
    %p59 = scmp.eq.s32.totalorder %s16, 1
    %p60 = por %p58, %p59
    %p62 = scmp.ne.s32.totalorder %s47, %s61
    %p63 = scmp.eq.s32.totalorder %s16, 0
    %p64 = por %p62, %p63
    %s66 = sadd.s32 %s65, 1
    %p69 = scmp.eq.s32.totalorder %s10, 1
    %p70 = scmp.ne.s32.totalorder %s65, %s67
    %p71 = scmp.eq.s32.totalorder %s10, 0
    %p72 = por %p70, %p71
    %p73 = scmp.ne.s32.totalorder %s65, %s67
    %p74 = scmp.eq.s32.totalorder %s15, 1
    %p75 = por %p73, %p74
    %p76 = scmp.ne.s32.totalorder %s67, %s68
    %p77 = scmp.eq.s32.totalorder %s15, 0
    %p78 = por %p76, %p77
    %p79 = scmp.ne.s32.totalorder %s67, %s68
    %p80 = scmp.eq.s32.totalorder %s16, 1
    %p81 = por %p79, %p80
    %p83 = scmp.ne.s32.totalorder %s68, %s82
    %p84 = scmp.eq.s32.totalorder %s16, 0
    %p85 = por %p83, %p84
    %s87 = sadd.s32 %s86, 1
    %p90 = scmp.eq.s32.totalorder %s10, 1
    %p91 = scmp.ne.s32.totalorder %s86, %s88
    %p92 = scmp.eq.s32.totalorder %s10, 0
    %p93 = por %p91, %p92
    %p94 = scmp.ne.s32.totalorder %s86, %s88
    %p95 = scmp.eq.s32.totalorder %s15, 1
    %p96 = por %p94, %p95
    %p97 = scmp.ne.s32.totalorder %s88, %s89
    %p98 = scmp.eq.s32.totalorder %s15, 0
    %p99 = por %p97, %p98
    %p100 = scmp.ne.s32.totalorder %s88, %s89
    %p101 = scmp.eq.s32.totalorder %s16, 1
    %p102 = por %p100, %p101
    %p104 = scmp.ne.s32.totalorder %s89, %s103
    %p105 = scmp.eq.s32.totalorder %s16, 0
    %p106 = por %p104, %p105
    %s107 = ssub.s32 %s10, %s17
    %p108 = scmp.eq.s32.totalorder %s107, 0
    %s110 = sadd.s32 %s109, 1
    %s111 = scalar_select %p108, %s109, %s110
    %p114 = pneg %p108
    %p115 = scmp.eq.s32.totalorder %s10, 1
    %p116 = por %p114, %p115
    %p117 = scmp.ne.s32.totalorder %s109, %s112
    %p118 = scmp.eq.s32.totalorder %s10, 0
    %p119 = por %p117, %p118
    %p120 = scmp.ne.s32.totalorder %s109, %s112
    %p121 = scmp.eq.s32.totalorder %s15, 1
    %p122 = por %p120, %p121
    %p123 = scmp.ne.s32.totalorder %s112, %s113
    %p124 = scmp.eq.s32.totalorder %s15, 0
    %p125 = por %p123, %p124
    %p126 = scmp.ne.s32.totalorder %s112, %s113
    %p127 = scmp.eq.s32.totalorder %s16, 1
    %p128 = por %p126, %p127
    %p130 = scmp.ne.s32.totalorder %s113, %s129
    %p131 = scmp.eq.s32.totalorder %s16, 0
    %p132 = por %p130, %p131
    %p133 = scmp.le.s32.totalorder 1, %s10
    %p134 = scmp.lt.s32.totalorder %s10, 3
    %p135 = pnand %p133, %p134
    %p136 = pneg %p135
    // Predicated region
    $region9: #{fpn_layer_forward.2} parent=5 // pred_check
      _
    $region10: #{fpn_layer_forward.2} parent=5 // pred_check_branch
      %138 = sbr.rel (%p135) target = $region12
    $region11: #{fpn_layer_forward.2} parent=5 // pred_region
      %s139 = ssub.s32 %s10, 1
      // Predicated region
      $region13: #{fpn_layer_forward.2} parent=11 // pred_check
        %p140 = pneg %p57
      $region14: #{fpn_layer_forward.2} parent=11 // pred_check_branch
        %142 = sbr.rel (%p140) target = $region16
      $region15: #{fpn_layer_forward.2} parent=11 // pred_region
        _
      $region16: #{fpn_layer_forward.2} parent=11 // pred_fallthru
        _
      // Predicated region
      $region17: #{fpn_layer_forward.2} parent=11 // pred_check
        %p143 = pneg %p78
      $region18: #{fpn_layer_forward.2} parent=11 // pred_check_branch
        %145 = sbr.rel (%p143) target = $region20
      $region19: #{fpn_layer_forward.2} parent=11 // pred_region
        _
      $region20: #{fpn_layer_forward.2} parent=11 // pred_fallthru
        _
      // Predicated region
      $region21: #{fpn_layer_forward.2} parent=11 // pred_check
        %p146 = pneg %p99
      $region22: #{fpn_layer_forward.2} parent=11 // pred_check_branch
        %148 = sbr.rel (%p146) target = $region24
      $region23: #{fpn_layer_forward.2} parent=11 // pred_region
        _
      $region24: #{fpn_layer_forward.2} parent=11 // pred_fallthru
        _
    $region12: #{fpn_layer_forward.2} parent=5 // pred_fallthru
      _
    %p149 = scmp.lt.s32.totalorder %s10, 2
    // Predicated region
    $region25: #{fpn_layer_forward.2} parent=5 // pred_check
      %p150 = pneg %p149
    $region26: #{fpn_layer_forward.2} parent=5 // pred_check_branch
      %152 = sbr.rel (%p150) target = $region28
    $region27: #{fpn_layer_forward.2} parent=5 // pred_region
      // Predicated region
      $region29: #{fpn_layer_forward.2} parent=27 // pred_check
        %p153 = pneg %p30
      $region30: #{fpn_layer_forward.2} parent=27 // pred_check_branch
        %155 = sbr.rel (%p153) target = $region32
      $region31: #{fpn_layer_forward.2} parent=27 // pred_region
        %p156 = scmp.lt.s32.totalorder %s10, 1
        %s157 = scalar_select %p156, %s10, 1
        %s158 = smul.addr %s157, 2
        %s159 = smul.addr %s158, 8
        %s160 = scalar_lea.vmem %s0, %s159
      $region32: #{fpn_layer_forward.2} parent=27 // pred_fallthru
        _
    $region28: #{fpn_layer_forward.2} parent=5 // pred_fallthru
      _
    %p161 = scmp.le.s32.totalorder 1, %s10
    %p162 = scmp.lt.s32.totalorder %s10, 3
    %p163 = pnand %p161, %p162
    %p164 = pneg %p163
    // Predicated region
    $region33: #{fpn_layer_forward.2} parent=5 // pred_check
      _
    $region34: #{fpn_layer_forward.2} parent=5 // pred_check_branch
      %166 = sbr.rel (%p163) target = $region36
    $region35: #{fpn_layer_forward.2} parent=5 // pred_region
      %s167 = ssub.s32 %s10, 1
      %p168 = scmp.lt.s32.totalorder %s15, 1
      %s169 = scalar_select %p168, %s15, 1
      %s170 = smul.addr %s169, 2
      %s171 = smul.addr %s170, 8
      %s172 = scalar_lea.vmem %s0, %s171
      %p173 = pneg %p36
      %p174 = pneg %p33
      %p175 = pneg %p57
      %p176 = pneg %p54
      %p177 = pneg %p78
      %p178 = pneg %p75
      %p179 = pneg %p99
      %p180 = pneg %p96
      %p181 = pneg %p125
      %p182 = pneg %p122
      %p183 = scmp.lt.s32.totalorder %s15, 1
      %s184 = scalar_select %p183, %s15, 1
      %s185 = smul.addr %s184, 4
      %s186 = smul.addr %s185, 4
      %s187 = scalar_lea.vmem %s4, %s186
      %p188 = scmp.lt.s32.totalorder %s15, 1
      %s189 = scalar_select %p188, %s15, 1
      %s190 = smul.addr %s189, 2
      %s191 = smul.addr %s190, 8
      %s192 = scalar_lea.vmem %s0, %s191
      %p193 = scmp.lt.s32.totalorder %s15, 1
      %s194 = scalar_select %p193, %s15, 1
      %s195 = smul.addr %s194, 4
      %s196 = smul.addr %s195, 4
      %s197 = scalar_lea.vmem %s4, %s196
      %v198 = vld [vmem:[%s192] sm:$0xff]
      %199 = vst [vmem:[#allocation2] sm:$0xff] %v198
      %v200 = vld [vmem:[%s192] sm:$0xff]
      %v201 = vld [vmem:[%s192 + $0x8] sm:$0xff]
      %204 = vrot.lane.b32.xlu0 %v200, 127
      %v205 = vpop.permute.xlu0 %204
      %206 = vrot.lane.b32.xlu0 %v201, 127
      %v207 = vpop.permute.xlu0 %206
      %vm208 = vcmask 1039360
      %v209 = vsel %vm208, %v205, %v207
      %211 = vst [vmem:[#allocation2 + $0x8] sm:$0xff] %v209
      %v212 = vld [vmem:[%s192] sm:$0xff]
      %v213 = vld [vmem:[%s192 + $0x8] sm:$0xff]
      %216 = vrot.lane.b32.xlu0 %v212, 118
      %v217 = vpop.permute.xlu0 %216
      %218 = vrot.lane.b32.xlu0 %v213, 118
      %v219 = vpop.permute.xlu0 %218
      %vm220 = vcmask 965632
      %v221 = vsel %vm220, %v217, %v219
      %223 = vst [vmem:[#allocation2 + $0x10] sm:$0xff] %v221
      %v224 = vld [vmem:[%s192] sm:$0xff]
      %v225 = vld [vmem:[%s192 + $0x8] sm:$0xff]
      %228 = vrot.lane.b32.xlu0 %v224, 117
      %v229 = vpop.permute.xlu0 %228
      %230 = vrot.lane.b32.xlu0 %v225, 117
      %v231 = vpop.permute.xlu0 %230
      %vm232 = vcmask 957440
      %v233 = vsel %vm232, %v229, %v231
      %235 = vst [vmem:[#allocation2 + $0x18] sm:$0xff] %v233
      %v236 = vld [vmem:[%s1] sm:$0xf]
      %v237 = vld [vmem:[#allocation2] sm:$0xff]
      %v238 = vld [vmem:[#allocation2 + $0x8] sm:$0xff]
      %v239 = vld [vmem:[#allocation2 + $0x10] sm:$0xff]
      %v240 = vld [vmem:[#allocation2 + $0x18] sm:$0xff]
      %vm241 = vcmask 261120
      %v243 = vsel %vm241, %v236, 0
      %245 = vmatprep.subr.mxu0 0.0
      %246 = vmatpush1.msra.mxu0 %v237
      %247 = vmatprep.subr.mxu0 0.0
      %248 = vmatpush1.msra.mxu0 %v238
      %249 = vmatprep.subr.mxu0 0.0
      %250 = vmatpush1.msra.mxu0 %v239
      %251 = vmatprep.subr.mxu0 0.0
      %252 = vmatpush1.msra.mxu0 %v240
      %253 = vmatprep.subr.mxu0 0.0
      %254 = vmatpush1.msra.mxu0 0.0
      %255 = vmatprep.subr.mxu0 0.0
      %256 = vmatpush1.msra.mxu0 0.0
      %257 = vmatprep.subr.mxu0 0.0
      %258 = vmatpush1.msra.mxu0 0.0
      %259 = vmatprep.subr.mxu0 0.0
      %260 = vmatpush1.msra.mxu0 0.0
      %261 = vmatprep.subr.mxu0 0.0
      %262 = vmatpush1.msra.mxu0 0.0
      %263 = vmatprep.subr.mxu0 0.0
      %264 = vmatpush1.msra.mxu0 0.0
      %265 = vmatprep.subr.mxu0 0.0
      %266 = vmatpush1.msra.mxu0 0.0
      %267 = vmatprep.subr.mxu0 0.0
      %268 = vmatpush1.msra.mxu0 0.0
      %269 = vmatprep.subr.mxu0 0.0
      %270 = vmatpush1.msra.mxu0 0.0
      %271 = vmatprep.subr.mxu0 0.0
      %272 = vmatpush1.msra.mxu0 0.0
      %273 = vmatprep.subr.mxu0 0.0
      %274 = vmatpush1.msra.mxu0 0.0
      %275 = vmatprep.subr.mxu0 0.0
      %276 = vmatpush1.msra.mxu0 0.0
      %277 = vmatprep.subr.mxu0 0.0
      %278 = vmatpush1.msra.mxu0 0.0
      %279 = vmatprep.subr.mxu0 0.0
      %280 = vmatpush1.msra.mxu0 0.0
      %281 = vmatprep.subr.mxu0 0.0
      %282 = vmatpush1.msra.mxu0 0.0
      %283 = vmatprep.subr.mxu0 0.0
      %284 = vmatpush1.msra.mxu0 0.0
      %285 = vmatprep.subr.mxu0 0.0
      %286 = vmatpush1.msra.mxu0 0.0
      %287 = vmatprep.subr.mxu0 0.0
      %288 = vmatpush1.msra.mxu0 0.0
      %289 = vmatprep.subr.mxu0 0.0
      %290 = vmatpush1.msra.mxu0 0.0
      %291 = vmatprep.subr.mxu0 0.0
      %292 = vmatpush1.msra.mxu0 0.0
      %293 = vmatprep.subr.mxu0 0.0
      %294 = vmatpush1.msra.mxu0 0.0
      %295 = vmatprep.subr.mxu0 0.0
      %296 = vmatpush1.msra.mxu0 0.0
      %297 = vmatprep.subr.mxu0 0.0
      %298 = vmatpush1.msra.mxu0 0.0
      %299 = vmatprep.subr.mxu0 0.0
      %300 = vmatpush1.msra.mxu0 0.0
      %301 = vmatprep.subr.mxu0 0.0
      %302 = vmatpush1.msra.mxu0 0.0
      %303 = vmatprep.subr.mxu0 0.0
      %304 = vmatpush1.msra.mxu0 0.0
      %305 = vmatprep.subr.mxu0 0.0
      %306 = vmatpush1.msra.mxu0 0.0
      %307 = vmatprep.subr.mxu0 0.0
      %308 = vmatpush1.msra.mxu0 0.0
      %309 = vmatprep.mubr.f32.mxu0 0.0
      %310 = vmatmul.mubr.f32.gmra.mrb[0].mxu0 %v243
      %v311 = vpop.f32.mrb[0].mxu0
      %v312 = vadd.f32 0.0, %v311
      %v313 = vpop.f32.mrb[0].mxu0
      %314 = vdwg.mxu0
      %v315 = vld [vmem:[%s2] sm:$0xf]
      %317 = vset.pattern.permute.xlu0 0
      %318 = vperm.xlu0 %317, %v315
      %v319 = vpop.permute.xlu0 %318
      %v321 = vmul.f32 %v312, %v319
      %v322 = vld [vmem:[%s3] sm:$0xf]
      %324 = vset.pattern.permute.xlu0 0
      %325 = vperm.xlu0 %324, %v322
      %v326 = vpop.permute.xlu0 %325
      %v328 = vadd.f32 %v321, %v326
      %vm329 = vcmp.ge.f32.partialorder %v328, 0.0
      %v330 = vmul.f32 %v328, 0.01
      %v331 = vsel %vm329, %v328, %v330
      %332 = vst [vmem:[%s197] sm:$0xf] %v331
      %v333 = vld [vmem:[%s192] sm:$0xff]
      %v334 = vld [vmem:[%s192 + $0x8] sm:$0xff]
      %337 = vrot.lane.b32.xlu0 %v333, 127
      %v338 = vpop.permute.xlu0 %337
      %339 = vrot.lane.b32.xlu0 %v334, 127
      %v340 = vpop.permute.xlu0 %339
      %v341 = vsel %vm208, %v338, %v340
      %343 = vst [vmem:[#allocation2] sm:$0xff] %v341
      %v344 = vld [vmem:[%s192] sm:$0xff]
      %v345 = vld [vmem:[%s192 + $0x8] sm:$0xff]
      %348 = vrot.lane.b32.xlu0 %v344, 126
      %v349 = vpop.permute.xlu0 %348
      %350 = vrot.lane.b32.xlu0 %v345, 126
      %v351 = vpop.permute.xlu0 %350
      %vm352 = vcmask 1031168
      %v353 = vsel %vm352, %v349, %v351
      %355 = vst [vmem:[#allocation2 + $0x8] sm:$0xff] %v353
      %v356 = vld [vmem:[%s192] sm:$0xff]
      %v357 = vld [vmem:[%s192 + $0x8] sm:$0xff]
      %360 = vrot.lane.b32.xlu0 %v356, 117
      %v361 = vpop.permute.xlu0 %360
      %362 = vrot.lane.b32.xlu0 %v357, 117
      %v363 = vpop.permute.xlu0 %362
      %v364 = vsel %vm232, %v361, %v363
      %366 = vst [vmem:[#allocation2 + $0x10] sm:$0xff] %v364
      %v367 = vld [vmem:[%s192] sm:$0xff]
      %v368 = vld [vmem:[%s192 + $0x8] sm:$0xff]
      %371 = vrot.lane.b32.xlu0 %v367, 116
      %v372 = vpop.permute.xlu0 %371
      %373 = vrot.lane.b32.xlu0 %v368, 116
      %v374 = vpop.permute.xlu0 %373
      %vm375 = vcmask 949248
      %v376 = vsel %vm375, %v372, %v374
      %378 = vst [vmem:[#allocation2 + $0x18] sm:$0xff] %v376
      %s379 = scalar_lea.vmem %s1, 4
      %v380 = vld [vmem:[%s379] sm:$0xf]
      %v381 = vld [vmem:[#allocation2] sm:$0xff]
      %v382 = vld [vmem:[#allocation2 + $0x8] sm:$0xff]
      %v383 = vld [vmem:[#allocation2 + $0x10] sm:$0xff]
      %v384 = vld [vmem:[#allocation2 + $0x18] sm:$0xff]
      %v386 = vsel %vm241, %v380, 0
      %388 = vmatprep.subr.mxu0 0.0
      %389 = vmatpush1.msra.mxu0 %v381
      %390 = vmatprep.subr.mxu0 0.0
      %391 = vmatpush1.msra.mxu0 %v382
      %392 = vmatprep.subr.mxu0 0.0
      %393 = vmatpush1.msra.mxu0 %v383
      %394 = vmatprep.subr.mxu0 0.0
      %395 = vmatpush1.msra.mxu0 %v384
      %396 = vmatprep.subr.mxu0 0.0
      %397 = vmatpush1.msra.mxu0 0.0
      %398 = vmatprep.subr.mxu0 0.0
      %399 = vmatpush1.msra.mxu0 0.0
      %400 = vmatprep.subr.mxu0 0.0
      %401 = vmatpush1.msra.mxu0 0.0
      %402 = vmatprep.subr.mxu0 0.0
      %403 = vmatpush1.msra.mxu0 0.0
      %404 = vmatprep.subr.mxu0 0.0
      %405 = vmatpush1.msra.mxu0 0.0
      %406 = vmatprep.subr.mxu0 0.0
      %407 = vmatpush1.msra.mxu0 0.0
      %408 = vmatprep.subr.mxu0 0.0
      %409 = vmatpush1.msra.mxu0 0.0
      %410 = vmatprep.subr.mxu0 0.0
      %411 = vmatpush1.msra.mxu0 0.0
      %412 = vmatprep.subr.mxu0 0.0
      %413 = vmatpush1.msra.mxu0 0.0
      %414 = vmatprep.subr.mxu0 0.0
      %415 = vmatpush1.msra.mxu0 0.0
      %416 = vmatprep.subr.mxu0 0.0
      %417 = vmatpush1.msra.mxu0 0.0
      %418 = vmatprep.subr.mxu0 0.0
      %419 = vmatpush1.msra.mxu0 0.0
      %420 = vmatprep.subr.mxu0 0.0
      %421 = vmatpush1.msra.mxu0 0.0
      %422 = vmatprep.subr.mxu0 0.0
      %423 = vmatpush1.msra.mxu0 0.0
      %424 = vmatprep.subr.mxu0 0.0
      %425 = vmatpush1.msra.mxu0 0.0
      %426 = vmatprep.subr.mxu0 0.0
      %427 = vmatpush1.msra.mxu0 0.0
      %428 = vmatprep.subr.mxu0 0.0
      %429 = vmatpush1.msra.mxu0 0.0
      %430 = vmatprep.subr.mxu0 0.0
      %431 = vmatpush1.msra.mxu0 0.0
      %432 = vmatprep.subr.mxu0 0.0
      %433 = vmatpush1.msra.mxu0 0.0
      %434 = vmatprep.subr.mxu0 0.0
      %435 = vmatpush1.msra.mxu0 0.0
      %436 = vmatprep.subr.mxu0 0.0
      %437 = vmatpush1.msra.mxu0 0.0
      %438 = vmatprep.subr.mxu0 0.0
      %439 = vmatpush1.msra.mxu0 0.0
      %440 = vmatprep.subr.mxu0 0.0
      %441 = vmatpush1.msra.mxu0 0.0
      %442 = vmatprep.subr.mxu0 0.0
      %443 = vmatpush1.msra.mxu0 0.0
      %444 = vmatprep.subr.mxu0 0.0
      %445 = vmatpush1.msra.mxu0 0.0
      %446 = vmatprep.subr.mxu0 0.0
      %447 = vmatpush1.msra.mxu0 0.0
      %448 = vmatprep.subr.mxu0 0.0
      %449 = vmatpush1.msra.mxu0 0.0
      %450 = vmatprep.subr.mxu0 0.0
      %451 = vmatpush1.msra.mxu0 0.0
      %452 = vmatprep.mubr.f32.mxu0 0.0
      %453 = vmatmul.mubr.f32.gmra.mrb[0].mxu0 %v386
      %v454 = vpop.f32.mrb[0].mxu0
      %v455 = vadd.f32 0.0, %v454
      %v456 = vpop.f32.mrb[0].mxu0
      %457 = vdwg.mxu0
      %v458 = vld [vmem:[%s2] sm:$0xf]
      %460 = vset.pattern.permute.xlu0 0
      %461 = vperm.xlu0 %460, %v458
      %v462 = vpop.permute.xlu0 %461
      %v464 = vmul.f32 %v455, %v462
      %v465 = vld [vmem:[%s3] sm:$0xf]
      %467 = vset.pattern.permute.xlu0 0
      %468 = vperm.xlu0 %467, %v465
      %v469 = vpop.permute.xlu0 %468
      %v471 = vadd.f32 %v464, %v469
      %vm472 = vcmp.ge.f32.partialorder %v471, 0.0
      %v473 = vmul.f32 %v471, 0.01
      %v474 = vsel %vm472, %v471, %v473
      %s475 = scalar_lea.vmem %s197, 4
      %476 = vst [vmem:[%s475] sm:$0xf] %v474
      %v477 = vld [vmem:[%s192] sm:$0xff]
      %v478 = vld [vmem:[%s192 + $0x8] sm:$0xff]
      %481 = vrot.lane.b32.xlu0 %v477, 118
      %v482 = vpop.permute.xlu0 %481
      %483 = vrot.lane.b32.xlu0 %v478, 118
      %v484 = vpop.permute.xlu0 %483
      %v485 = vsel %vm220, %v482, %v484
      %487 = vst [vmem:[#allocation2] sm:$0xff] %v485
      %v488 = vld [vmem:[%s192] sm:$0xff]
      %v489 = vld [vmem:[%s192 + $0x8] sm:$0xff]
      %492 = vrot.lane.b32.xlu0 %v488, 117
      %v493 = vpop.permute.xlu0 %492
      %494 = vrot.lane.b32.xlu0 %v489, 117
      %v495 = vpop.permute.xlu0 %494
      %v496 = vsel %vm232, %v493, %v495
      %498 = vst [vmem:[#allocation2 + $0x8] sm:$0xff] %v496
      %v499 = vld [vmem:[%s192] sm:$0xff]
      %v500 = vld [vmem:[%s192 + $0x8] sm:$0xff]
      %503 = vrot.lane.b32.xlu0 %v499, 108
      %v504 = vpop.permute.xlu0 %503
      %505 = vrot.lane.b32.xlu0 %v500, 108
      %v506 = vpop.permute.xlu0 %505
      %vm507 = vcmask 883712
      %v508 = vsel %vm507, %v504, %v506
      %510 = vst [vmem:[#allocation2 + $0x10] sm:$0xff] %v508
      %v511 = vld [vmem:[%s192] sm:$0xff]
      %v512 = vld [vmem:[%s192 + $0x8] sm:$0xff]
      %515 = vrot.lane.b32.xlu0 %v511, 107
      %v516 = vpop.permute.xlu0 %515
      %517 = vrot.lane.b32.xlu0 %v512, 107
      %v518 = vpop.permute.xlu0 %517
      %vm519 = vcmask 875520
      %v520 = vsel %vm519, %v516, %v518
      %522 = vst [vmem:[#allocation2 + $0x18] sm:$0xff] %v520
      %s523 = scalar_lea.vmem %s1, 8
      %v524 = vld [vmem:[%s523] sm:$0xf]
      %v525 = vld [vmem:[#allocation2] sm:$0xff]
      %v526 = vld [vmem:[#allocation2 + $0x8] sm:$0xff]
      %v527 = vld [vmem:[#allocation2 + $0x10] sm:$0xff]
      %v528 = vld [vmem:[#allocation2 + $0x18] sm:$0xff]
      %v530 = vsel %vm241, %v524, 0
      %532 = vmatprep.subr.mxu0 0.0
      %533 = vmatpush1.msra.mxu0 %v525
      %534 = vmatprep.subr.mxu0 0.0
      %535 = vmatpush1.msra.mxu0 %v526
      %536 = vmatprep.subr.mxu0 0.0
      %537 = vmatpush1.msra.mxu0 %v527
      %538 = vmatprep.subr.mxu0 0.0
      %539 = vmatpush1.msra.mxu0 %v528
      %540 = vmatprep.subr.mxu0 0.0
      %541 = vmatpush1.msra.mxu0 0.0
      %542 = vmatprep.subr.mxu0 0.0
      %543 = vmatpush1.msra.mxu0 0.0
      %544 = vmatprep.subr.mxu0 0.0
      %545 = vmatpush1.msra.mxu0 0.0
      %546 = vmatprep.subr.mxu0 0.0
      %547 = vmatpush1.msra.mxu0 0.0
      %548 = vmatprep.subr.mxu0 0.0
      %549 = vmatpush1.msra.mxu0 0.0
      %550 = vmatprep.subr.mxu0 0.0
      %551 = vmatpush1.msra.mxu0 0.0
      %552 = vmatprep.subr.mxu0 0.0
      %553 = vmatpush1.msra.mxu0 0.0
      %554 = vmatprep.subr.mxu0 0.0
      %555 = vmatpush1.msra.mxu0 0.0
      %556 = vmatprep.subr.mxu0 0.0
      %557 = vmatpush1.msra.mxu0 0.0
      %558 = vmatprep.subr.mxu0 0.0
      %559 = vmatpush1.msra.mxu0 0.0
      %560 = vmatprep.subr.mxu0 0.0
      %561 = vmatpush1.msra.mxu0 0.0
      %562 = vmatprep.subr.mxu0 0.0
      %563 = vmatpush1.msra.mxu0 0.0
      %564 = vmatprep.subr.mxu0 0.0
      %565 = vmatpush1.msra.mxu0 0.0
      %566 = vmatprep.subr.mxu0 0.0
      %567 = vmatpush1.msra.mxu0 0.0
      %568 = vmatprep.subr.mxu0 0.0
      %569 = vmatpush1.msra.mxu0 0.0
      %570 = vmatprep.subr.mxu0 0.0
      %571 = vmatpush1.msra.mxu0 0.0
      %572 = vmatprep.subr.mxu0 0.0
      %573 = vmatpush1.msra.mxu0 0.0
      %574 = vmatprep.subr.mxu0 0.0
      %575 = vmatpush1.msra.mxu0 0.0
      %576 = vmatprep.subr.mxu0 0.0
      %577 = vmatpush1.msra.mxu0 0.0
      %578 = vmatprep.subr.mxu0 0.0
      %579 = vmatpush1.msra.mxu0 0.0
      %580 = vmatprep.subr.mxu0 0.0
      %581 = vmatpush1.msra.mxu0 0.0
      %582 = vmatprep.subr.mxu0 0.0
      %583 = vmatpush1.msra.mxu0 0.0
      %584 = vmatprep.subr.mxu0 0.0
      %585 = vmatpush1.msra.mxu0 0.0
      %586 = vmatprep.subr.mxu0 0.0
      %587 = vmatpush1.msra.mxu0 0.0
      %588 = vmatprep.subr.mxu0 0.0
      %589 = vmatpush1.msra.mxu0 0.0
      %590 = vmatprep.subr.mxu0 0.0
      %591 = vmatpush1.msra.mxu0 0.0
      %592 = vmatprep.subr.mxu0 0.0
      %593 = vmatpush1.msra.mxu0 0.0
      %594 = vmatprep.subr.mxu0 0.0
      %595 = vmatpush1.msra.mxu0 0.0
      %596 = vmatprep.mubr.f32.mxu0 0.0
      %597 = vmatmul.mubr.f32.gmra.mrb[0].mxu0 %v530
      %v598 = vpop.f32.mrb[0].mxu0
      %v599 = vadd.f32 0.0, %v598
      %v600 = vpop.f32.mrb[0].mxu0
      %601 = vdwg.mxu0
      %v602 = vld [vmem:[%s2] sm:$0xf]
      %604 = vset.pattern.permute.xlu0 0
      %605 = vperm.xlu0 %604, %v602
      %v606 = vpop.permute.xlu0 %605
      %v608 = vmul.f32 %v599, %v606
      %v609 = vld [vmem:[%s3] sm:$0xf]
      %611 = vset.pattern.permute.xlu0 0
      %612 = vperm.xlu0 %611, %v609
      %v613 = vpop.permute.xlu0 %612
      %v615 = vadd.f32 %v608, %v613
      %vm616 = vcmp.ge.f32.partialorder %v615, 0.0
      %v617 = vmul.f32 %v615, 0.01
      %v618 = vsel %vm616, %v615, %v617
      %s619 = scalar_lea.vmem %s197, 8
      %620 = vst [vmem:[%s619] sm:$0xf] %v618
      %v621 = vld [vmem:[%s192] sm:$0xff]
      %v622 = vld [vmem:[%s192 + $0x8] sm:$0xff]
      %625 = vrot.lane.b32.xlu0 %v621, 117
      %v626 = vpop.permute.xlu0 %625
      %627 = vrot.lane.b32.xlu0 %v622, 117
      %v628 = vpop.permute.xlu0 %627
      %v629 = vsel %vm232, %v626, %v628
      %631 = vst [vmem:[#allocation2] sm:$0xff] %v629
      %v632 = vld [vmem:[%s192] sm:$0xff]
      %v633 = vld [vmem:[%s192 + $0x8] sm:$0xff]
      %636 = vrot.lane.b32.xlu0 %v632, 116
      %v637 = vpop.permute.xlu0 %636
      %638 = vrot.lane.b32.xlu0 %v633, 116
      %v639 = vpop.permute.xlu0 %638
      %v640 = vsel %vm375, %v637, %v639
      %642 = vst [vmem:[#allocation2 + $0x8] sm:$0xff] %v640
      %v643 = vld [vmem:[%s192] sm:$0xff]
      %v644 = vld [vmem:[%s192 + $0x8] sm:$0xff]
      %647 = vrot.lane.b32.xlu0 %v643, 107
      %v648 = vpop.permute.xlu0 %647
      %649 = vrot.lane.b32.xlu0 %v644, 107
      %v650 = vpop.permute.xlu0 %649
      %v651 = vsel %vm519, %v648, %v650
      %653 = vst [vmem:[#allocation2 + $0x10] sm:$0xff] %v651
      %v654 = vld [vmem:[%s192] sm:$0xff]
      %v655 = vld [vmem:[%s192 + $0x8] sm:$0xff]
      %658 = vrot.lane.b32.xlu0 %v654, 106
      %v659 = vpop.permute.xlu0 %658
      %660 = vrot.lane.b32.xlu0 %v655, 106
      %v661 = vpop.permute.xlu0 %660
      %vm662 = vcmask 867328
      %v663 = vsel %vm662, %v659, %v661
      %665 = vst [vmem:[#allocation2 + $0x18] sm:$0xff] %v663
      %s666 = scalar_lea.vmem %s1, 12
      %v667 = vld [vmem:[%s666] sm:$0xf]
      %v668 = vld [vmem:[#allocation2] sm:$0xff]
      %v669 = vld [vmem:[#allocation2 + $0x8] sm:$0xff]
      %v670 = vld [vmem:[#allocation2 + $0x10] sm:$0xff]
      %v671 = vld [vmem:[#allocation2 + $0x18] sm:$0xff]
      %v673 = vsel %vm241, %v667, 0
      %675 = vmatprep.subr.mxu0 0.0
      %676 = vmatpush1.msra.mxu0 %v668
      %677 = vmatprep.subr.mxu0 0.0
      %678 = vmatpush1.msra.mxu0 %v669
      %679 = vmatprep.subr.mxu0 0.0
      %680 = vmatpush1.msra.mxu0 %v670
      %681 = vmatprep.subr.mxu0 0.0
      %682 = vmatpush1.msra.mxu0 %v671
      %683 = vmatprep.subr.mxu0 0.0
      %684 = vmatpush1.msra.mxu0 0.0
      %685 = vmatprep.subr.mxu0 0.0
      %686 = vmatpush1.msra.mxu0 0.0
      %687 = vmatprep.subr.mxu0 0.0
      %688 = vmatpush1.msra.mxu0 0.0
      %689 = vmatprep.subr.mxu0 0.0
      %690 = vmatpush1.msra.mxu0 0.0
      %691 = vmatprep.subr.mxu0 0.0
      %692 = vmatpush1.msra.mxu0 0.0
      %693 = vmatprep.subr.mxu0 0.0
      %694 = vmatpush1.msra.mxu0 0.0
      %695 = vmatprep.subr.mxu0 0.0
      %696 = vmatpush1.msra.mxu0 0.0
      %697 = vmatprep.subr.mxu0 0.0
      %698 = vmatpush1.msra.mxu0 0.0
      %699 = vmatprep.subr.mxu0 0.0
      %700 = vmatpush1.msra.mxu0 0.0
      %701 = vmatprep.subr.mxu0 0.0
      %702 = vmatpush1.msra.mxu0 0.0
      %703 = vmatprep.subr.mxu0 0.0
      %704 = vmatpush1.msra.mxu0 0.0
      %705 = vmatprep.subr.mxu0 0.0
      %706 = vmatpush1.msra.mxu0 0.0
      %707 = vmatprep.subr.mxu0 0.0
      %708 = vmatpush1.msra.mxu0 0.0
      %709 = vmatprep.subr.mxu0 0.0
      %710 = vmatpush1.msra.mxu0 0.0
      %711 = vmatprep.subr.mxu0 0.0
      %712 = vmatpush1.msra.mxu0 0.0
      %713 = vmatprep.subr.mxu0 0.0
      %714 = vmatpush1.msra.mxu0 0.0
      %715 = vmatprep.subr.mxu0 0.0
      %716 = vmatpush1.msra.mxu0 0.0
      %717 = vmatprep.subr.mxu0 0.0
      %718 = vmatpush1.msra.mxu0 0.0
      %719 = vmatprep.subr.mxu0 0.0
      %720 = vmatpush1.msra.mxu0 0.0
      %721 = vmatprep.subr.mxu0 0.0
      %722 = vmatpush1.msra.mxu0 0.0
      %723 = vmatprep.subr.mxu0 0.0
      %724 = vmatpush1.msra.mxu0 0.0
      %725 = vmatprep.subr.mxu0 0.0
      %726 = vmatpush1.msra.mxu0 0.0
      %727 = vmatprep.subr.mxu0 0.0
      %728 = vmatpush1.msra.mxu0 0.0
      %729 = vmatprep.subr.mxu0 0.0
      %730 = vmatpush1.msra.mxu0 0.0
      %731 = vmatprep.subr.mxu0 0.0
      %732 = vmatpush1.msra.mxu0 0.0
      %733 = vmatprep.subr.mxu0 0.0
      %734 = vmatpush1.msra.mxu0 0.0
      %735 = vmatprep.subr.mxu0 0.0
      %736 = vmatpush1.msra.mxu0 0.0
      %737 = vmatprep.subr.mxu0 0.0
      %738 = vmatpush1.msra.mxu0 0.0
      %739 = vmatprep.mubr.f32.mxu0 0.0
      %740 = vmatmul.mubr.f32.gmra.mrb[0].mxu0 %v673
      %v741 = vpop.f32.mrb[0].mxu0
      %v742 = vadd.f32 0.0, %v741
      %v743 = vpop.f32.mrb[0].mxu0
      %744 = vdwg.mxu0
      %v745 = vld [vmem:[%s2] sm:$0xf]
      %747 = vset.pattern.permute.xlu0 0
      %748 = vperm.xlu0 %747, %v745
      %v749 = vpop.permute.xlu0 %748
      %v751 = vmul.f32 %v742, %v749
      %v752 = vld [vmem:[%s3] sm:$0xf]
      %754 = vset.pattern.permute.xlu0 0
      %755 = vperm.xlu0 %754, %v752
      %v756 = vpop.permute.xlu0 %755
      %v758 = vadd.f32 %v751, %v756
      %vm759 = vcmp.ge.f32.partialorder %v758, 0.0
      %v760 = vmul.f32 %v758, 0.01
      %v761 = vsel %vm759, %v758, %v760
      %s762 = scalar_lea.vmem %s197, 12
      %763 = vst [vmem:[%s762] sm:$0xf] %v761
      %p764 = scmp.lt.s32.totalorder %s15, 1
      %s765 = scalar_select %p764, %s15, 1
      %s766 = smul.addr %s765, 4
      %s767 = smul.addr %s766, 4
      %s768 = scalar_lea.vmem %s4, %s767
      // Predicated region
      $region37: #{fpn_layer_forward.2} parent=35 // pred_check
        %p769 = pneg %p122
      $region38: #{fpn_layer_forward.2} parent=35 // pred_check_branch
        %771 = sbr.rel (%p769) target = $region40
      $region39: #{fpn_layer_forward.2} parent=35 // pred_region
        _
      $region40: #{fpn_layer_forward.2} parent=35 // pred_fallthru
        _
    $region36: #{fpn_layer_forward.2} parent=5 // pred_fallthru
      _
    %p772 = scmp.le.s32.totalorder 2, %s10
    // Predicated region
    $region41: #{fpn_layer_forward.2} parent=5 // pred_check
      %p773 = pneg %p772
    $region42: #{fpn_layer_forward.2} parent=5 // pred_check_branch
      %775 = sbr.rel (%p773) target = $region44
    $region43: #{fpn_layer_forward.2} parent=5 // pred_region
      %s776 = ssub.s32 %s10, 2
      // Predicated region
      $region45: #{fpn_layer_forward.2} parent=43 // pred_check
        %p777 = pneg %p128
      $region46: #{fpn_layer_forward.2} parent=43 // pred_check_branch
        %779 = sbr.rel (%p777) target = $region48
      $region47: #{fpn_layer_forward.2} parent=43 // pred_region
        %p780 = scmp.lt.s32.totalorder %s16, 1
        %s781 = scalar_select %p780, %s16, 1
        %s782 = smul.addr %s781, 4
        %s783 = smul.addr %s782, 4
        %s784 = scalar_lea.vmem %s4, %s783
      $region48: #{fpn_layer_forward.2} parent=43 // pred_fallthru
        _
    $region44: #{fpn_layer_forward.2} parent=5 // pred_fallthru
      _
  $region6: #{fpn_layer_forward.2} parent=0 // loop_footer
    %s14 = sadd.s32 1, %s10
  $region7: #{fpn_layer_forward.2} parent=0 // loop_footer_branch
    %9 = sbr.rel target = $region3
  $region8: #{fpn_layer_forward.2} parent=0 // loop_exit
    _

// kernel: fpn_layer_forward.3
$region0: #{fpn_layer_forward.3}
  #allocation0 [shape = 'u32[]', space=smem, size = 0x4, offset = 0x4, fixed_abs, tag = 'smem constant byte address 0x4 - core index']
  #allocation1 [shape = 'u32[144,128]{1,0:T(1,128)}', space=vmem, size = 0x12000, scoped, tag = 'internal scratch']
  #allocation2 [shape = 'f32[72,384]{1,0:T(8,128)}', space=vmem, size = 0x1b000, scoped, tag = 'scratch operand']
  %s0 = inlined_call_operand.vmem [shape: f32[2,4,512], index: 0, kind: input, shape index: {}]
  %s1 = inlined_call_operand.vmem [shape: f32[2,4,512], index: 1, kind: input, shape index: {}]
  %s2 = inlined_call_operand.vmem [shape: f32[8,72], index: 2, kind: input, shape index: {}]
  %s3 = inlined_call_operand.vmem [shape: f32[8,1], index: 3, kind: input, shape index: {}]
  %s4 = inlined_call_operand.vmem [shape: f32[8,1], index: 4, kind: input, shape index: {}]
  %s5 = inlined_call_operand.vmem [shape: f32[2,8,384], index: 5, kind: output, shape index: {}]
  %s6 = sld [smem:[#allocation0]]
  $region53: #{fpn_layer_forward.3} parent=0
    _
  %s8 = ssub.s32 1, %s6
  %s9 = scalar_select 0, %s8, %s6
  loop: start=0, step=1, limit=4
  $region2: #{fpn_layer_forward.3} parent=0 // loop_pre_header
    _
  $region3: #{fpn_layer_forward.3} parent=0 // loop_header
    %s11 = sphi 0, %s15
    %p12 = scmp.ge.s32.totalorder %s11, 4
    %s21 = sphi 0, %s23
    %s24 = sphi 0, %s21
    %s25 = sphi 0, %s24
    %s41 = sphi 0, %s25
    %s47 = sphi 0, %s49
    %s50 = sphi 0, %s47
    %s51 = sphi 0, %s50
    %s67 = sphi 0, %s51
    %s71 = sphi 0, %s71
    %s73 = sphi 0, %s71
    %s74 = sphi 0, %s73
    %s88 = sphi 0, %s74
    %s92 = sphi 0, %s92
    %s94 = sphi 0, %s92
    %s95 = sphi 0, %s94
    %s109 = sphi 0, %s95
    %s113 = sphi 0, %s113
    %s115 = sphi 0, %s113
    %s116 = sphi 0, %s115
    %s130 = sphi 0, %s116
    %s136 = sphi 0, %s138
    %s139 = sphi 0, %s136
    %s140 = sphi 0, %s139
    %s156 = sphi 0, %s140
  $region4: #{fpn_layer_forward.3} parent=0 // loop_header_branch
    %14 = sbr.rel (%p12) target = $region8
  $region5: #{fpn_layer_forward.3} parent=0 // loop_body
    %s16 = ssub.s32 %s11, 1
    %s17 = ssub.s32 %s11, 2
    %s18 = sadd.s32 %s11, 1
    %s19 = ssub.s32 %s11, %s18
    %p20 = scmp.eq.s32.totalorder %s19, 0
    %s22 = sadd.s32 %s21, 1
    %s23 = scalar_select %p20, %s21, %s22
    %p26 = pneg %p20
    %p27 = scmp.eq.s32.totalorder %s11, 1
    %p28 = por %p26, %p27
    %p29 = scmp.ne.s32.totalorder %s21, %s24
    %p30 = scmp.eq.s32.totalorder %s11, 0
    %p31 = por %p29, %p30
    %p32 = scmp.ne.s32.totalorder %s21, %s24
    %p33 = scmp.eq.s32.totalorder %s16, 1
    %p34 = por %p32, %p33
    %p35 = scmp.ne.s32.totalorder %s24, %s25
    %p36 = scmp.eq.s32.totalorder %s16, 0
    %p37 = por %p35, %p36
    %p38 = scmp.ne.s32.totalorder %s24, %s25
    %p39 = scmp.eq.s32.totalorder %s17, 1
    %p40 = por %p38, %p39
    %p42 = scmp.ne.s32.totalorder %s25, %s41
    %p43 = scmp.eq.s32.totalorder %s17, 0
    %p44 = por %p42, %p43
    %s45 = ssub.s32 %s11, %s18
    %p46 = scmp.eq.s32.totalorder %s45, 0
    %s48 = sadd.s32 %s47, 1
    %s49 = scalar_select %p46, %s47, %s48
    %p52 = pneg %p46
    %p53 = scmp.eq.s32.totalorder %s11, 1
    %p54 = por %p52, %p53
    %p55 = scmp.ne.s32.totalorder %s47, %s50
    %p56 = scmp.eq.s32.totalorder %s11, 0
    %p57 = por %p55, %p56
    %p58 = scmp.ne.s32.totalorder %s47, %s50
    %p59 = scmp.eq.s32.totalorder %s16, 1
    %p60 = por %p58, %p59
    %p61 = scmp.ne.s32.totalorder %s50, %s51
    %p62 = scmp.eq.s32.totalorder %s16, 0
    %p63 = por %p61, %p62
    %p64 = scmp.ne.s32.totalorder %s50, %s51
    %p65 = scmp.eq.s32.totalorder %s17, 1
    %p66 = por %p64, %p65
    %p68 = scmp.ne.s32.totalorder %s51, %s67
    %p69 = scmp.eq.s32.totalorder %s17, 0
    %p70 = por %p68, %p69
    %s72 = sadd.s32 %s71, 1
    %p75 = scmp.eq.s32.totalorder %s11, 1
    %p76 = scmp.ne.s32.totalorder %s71, %s73
    %p77 = scmp.eq.s32.totalorder %s11, 0
    %p78 = por %p76, %p77
    %p79 = scmp.ne.s32.totalorder %s71, %s73
    %p80 = scmp.eq.s32.totalorder %s16, 1
    %p81 = por %p79, %p80
    %p82 = scmp.ne.s32.totalorder %s73, %s74
    %p83 = scmp.eq.s32.totalorder %s16, 0
    %p84 = por %p82, %p83
    %p85 = scmp.ne.s32.totalorder %s73, %s74
    %p86 = scmp.eq.s32.totalorder %s17, 1
    %p87 = por %p85, %p86
    %p89 = scmp.ne.s32.totalorder %s74, %s88
    %p90 = scmp.eq.s32.totalorder %s17, 0
    %p91 = por %p89, %p90
    %s93 = sadd.s32 %s92, 1
    %p96 = scmp.eq.s32.totalorder %s11, 1
    %p97 = scmp.ne.s32.totalorder %s92, %s94
    %p98 = scmp.eq.s32.totalorder %s11, 0
    %p99 = por %p97, %p98
    %p100 = scmp.ne.s32.totalorder %s92, %s94
    %p101 = scmp.eq.s32.totalorder %s16, 1
    %p102 = por %p100, %p101
    %p103 = scmp.ne.s32.totalorder %s94, %s95
    %p104 = scmp.eq.s32.totalorder %s16, 0
    %p105 = por %p103, %p104
    %p106 = scmp.ne.s32.totalorder %s94, %s95
    %p107 = scmp.eq.s32.totalorder %s17, 1
    %p108 = por %p106, %p107
    %p110 = scmp.ne.s32.totalorder %s95, %s109
    %p111 = scmp.eq.s32.totalorder %s17, 0
    %p112 = por %p110, %p111
    %s114 = sadd.s32 %s113, 1
    %p117 = scmp.eq.s32.totalorder %s11, 1
    %p118 = scmp.ne.s32.totalorder %s113, %s115
    %p119 = scmp.eq.s32.totalorder %s11, 0
    %p120 = por %p118, %p119
    %p121 = scmp.ne.s32.totalorder %s113, %s115
    %p122 = scmp.eq.s32.totalorder %s16, 1
    %p123 = por %p121, %p122
    %p124 = scmp.ne.s32.totalorder %s115, %s116
    %p125 = scmp.eq.s32.totalorder %s16, 0
    %p126 = por %p124, %p125
    %p127 = scmp.ne.s32.totalorder %s115, %s116
    %p128 = scmp.eq.s32.totalorder %s17, 1
    %p129 = por %p127, %p128
    %p131 = scmp.ne.s32.totalorder %s116, %s130
    %p132 = scmp.eq.s32.totalorder %s17, 0
    %p133 = por %p131, %p132
    %s134 = ssub.s32 %s11, %s18
    %p135 = scmp.eq.s32.totalorder %s134, 0
    %s137 = sadd.s32 %s136, 1
    %s138 = scalar_select %p135, %s136, %s137
    %p141 = pneg %p135
    %p142 = scmp.eq.s32.totalorder %s11, 1
    %p143 = por %p141, %p142
    %p144 = scmp.ne.s32.totalorder %s136, %s139
    %p145 = scmp.eq.s32.totalorder %s11, 0
    %p146 = por %p144, %p145
    %p147 = scmp.ne.s32.totalorder %s136, %s139
    %p148 = scmp.eq.s32.totalorder %s16, 1
    %p149 = por %p147, %p148
    %p150 = scmp.ne.s32.totalorder %s139, %s140
    %p151 = scmp.eq.s32.totalorder %s16, 0
    %p152 = por %p150, %p151
    %p153 = scmp.ne.s32.totalorder %s139, %s140
    %p154 = scmp.eq.s32.totalorder %s17, 1
    %p155 = por %p153, %p154
    %p157 = scmp.ne.s32.totalorder %s140, %s156
    %p158 = scmp.eq.s32.totalorder %s17, 0
    %p159 = por %p157, %p158
    %p160 = scmp.le.s32.totalorder 1, %s11
    %p161 = scmp.lt.s32.totalorder %s11, 3
    %p162 = pnand %p160, %p161
    %p163 = pneg %p162
    // Predicated region
    $region9: #{fpn_layer_forward.3} parent=5 // pred_check
      _
    $region10: #{fpn_layer_forward.3} parent=5 // pred_check_branch
      %165 = sbr.rel (%p162) target = $region12
    $region11: #{fpn_layer_forward.3} parent=5 // pred_region
      %s166 = ssub.s32 %s11, 1
      // Predicated region
      $region13: #{fpn_layer_forward.3} parent=11 // pred_check
        %p167 = pneg %p84
      $region14: #{fpn_layer_forward.3} parent=11 // pred_check_branch
        %169 = sbr.rel (%p167) target = $region16
      $region15: #{fpn_layer_forward.3} parent=11 // pred_region
        _
      $region16: #{fpn_layer_forward.3} parent=11 // pred_fallthru
        _
      // Predicated region
      $region17: #{fpn_layer_forward.3} parent=11 // pred_check
        %p170 = pneg %p105
      $region18: #{fpn_layer_forward.3} parent=11 // pred_check_branch
        %172 = sbr.rel (%p170) target = $region20
      $region19: #{fpn_layer_forward.3} parent=11 // pred_region
        _
      $region20: #{fpn_layer_forward.3} parent=11 // pred_fallthru
        _
      // Predicated region
      $region21: #{fpn_layer_forward.3} parent=11 // pred_check
        %p173 = pneg %p126
      $region22: #{fpn_layer_forward.3} parent=11 // pred_check_branch
        %175 = sbr.rel (%p173) target = $region24
      $region23: #{fpn_layer_forward.3} parent=11 // pred_region
        _
      $region24: #{fpn_layer_forward.3} parent=11 // pred_fallthru
        _
    $region12: #{fpn_layer_forward.3} parent=5 // pred_fallthru
      _
    %p176 = scmp.lt.s32.totalorder %s11, 2
    // Predicated region
    $region25: #{fpn_layer_forward.3} parent=5 // pred_check
      %p177 = pneg %p176
    $region26: #{fpn_layer_forward.3} parent=5 // pred_check_branch
      %179 = sbr.rel (%p177) target = $region28
    $region27: #{fpn_layer_forward.3} parent=5 // pred_region
      // Predicated region
      $region29: #{fpn_layer_forward.3} parent=27 // pred_check
        %p180 = pneg %p31
      $region30: #{fpn_layer_forward.3} parent=27 // pred_check_branch
        %182 = sbr.rel (%p180) target = $region32
      $region31: #{fpn_layer_forward.3} parent=27 // pred_region
        %p183 = scmp.lt.s32.totalorder %s11, 1
        %s184 = scalar_select %p183, %s11, 1
        %s185 = smul.addr %s184, 4
        %s186 = smul.addr %s185, 4
        %s187 = scalar_lea.vmem %s0, %s186
      $region32: #{fpn_layer_forward.3} parent=27 // pred_fallthru
        _
      // Predicated region
      $region33: #{fpn_layer_forward.3} parent=27 // pred_check
        %p188 = pneg %p57
      $region34: #{fpn_layer_forward.3} parent=27 // pred_check_branch
        %190 = sbr.rel (%p188) target = $region36
      $region35: #{fpn_layer_forward.3} parent=27 // pred_region
        %p191 = scmp.lt.s32.totalorder %s11, 1
        %s192 = scalar_select %p191, %s11, 1
        %s193 = smul.addr %s192, 4
        %s194 = smul.addr %s193, 4
        %s195 = scalar_lea.vmem %s1, %s194
      $region36: #{fpn_layer_forward.3} parent=27 // pred_fallthru
        _
    $region28: #{fpn_layer_forward.3} parent=5 // pred_fallthru
      _
    %p196 = scmp.le.s32.totalorder 1, %s11
    %p197 = scmp.lt.s32.totalorder %s11, 3
    %p198 = pnand %p196, %p197
    %p199 = pneg %p198
    // Predicated region
    $region37: #{fpn_layer_forward.3} parent=5 // pred_check
      _
    $region38: #{fpn_layer_forward.3} parent=5 // pred_check_branch
      %201 = sbr.rel (%p198) target = $region40
    $region39: #{fpn_layer_forward.3} parent=5 // pred_region
      %s202 = ssub.s32 %s11, 1
      %p203 = scmp.lt.s32.totalorder %s16, 1
      %s204 = scalar_select %p203, %s16, 1
      %s205 = smul.addr %s204, 4
      %s206 = smul.addr %s205, 4
      %s207 = scalar_lea.vmem %s0, %s206
      %p208 = pneg %p37
      %p209 = pneg %p34
      %p210 = scmp.lt.s32.totalorder %s16, 1
      %s211 = scalar_select %p210, %s16, 1
      %s212 = smul.addr %s211, 4
      %s213 = smul.addr %s212, 4
      %s214 = scalar_lea.vmem %s1, %s213
      %p215 = pneg %p63
      %p216 = pneg %p60
      %p217 = pneg %p84
      %p218 = pneg %p81
      %p219 = pneg %p105
      %p220 = pneg %p102
      %p221 = pneg %p126
      %p222 = pneg %p123
      %p223 = pneg %p152
      %p224 = pneg %p149
      %p225 = scmp.lt.s32.totalorder %s16, 1
      %s226 = scalar_select %p225, %s16, 1
      %s227 = smul.addr %s226, 3
      %s228 = smul.addr %s227, 8
      %s229 = scalar_lea.vmem %s5, %s228
      %p230 = scmp.lt.s32.totalorder %s16, 1
      %s231 = scalar_select %p230, %s16, 1
      %s232 = smul.addr %s231, 4
      %s233 = smul.addr %s232, 4
      %s234 = scalar_lea.vmem %s0, %s233
      %p235 = scmp.lt.s32.totalorder %s16, 1
      %s236 = scalar_select %p235, %s16, 1
      %s237 = smul.addr %s236, 4
      %s238 = smul.addr %s237, 4
      %s239 = scalar_lea.vmem %s1, %s238
      %p240 = scmp.lt.s32.totalorder %s16, 1
      %s241 = scalar_select %p240, %s16, 1
      %s242 = smul.addr %s241, 3
      %s243 = smul.addr %s242, 8
      %s244 = scalar_lea.vmem %s5, %s243
      %v245 = vld [vmem:[%s234] sm:$0xff]
      %v246 = vld [vmem:[%s234 + $0x8] sm:$0xf]
      %v248 = vcombine.high %v245, %v245
      %250 = vst [vmem:[#allocation2] sm:$0xf] %v245
      %251 = vst [vmem:[#allocation2 + $0x8] sm:$0xf] %v248
      %252 = vst [vmem:[#allocation2 + $0x10] sm:$0xf] %v246
      %v253 = vld [vmem:[%s234] sm:$0xff]
      %v254 = vld [vmem:[%s234 + $0x8] sm:$0xff]
      %v257 = vcombine.low %v253, %v253
      %v258 = vcombine.low %v254, %v254
      %259 = vrot.lane.b32.xlu0 %v257, 127
      %v260 = vpop.permute.xlu0 %259
      %261 = vrot.lane.b32.xlu0 %v253, 127
      %v262 = vpop.permute.xlu0 %261
      %263 = vrot.lane.b32.xlu0 %v258, 127
      %v264 = vpop.permute.xlu0 %263
      %265 = vrot.lane.b32.xlu0 %v254, 127
      %v266 = vpop.permute.xlu0 %265
      %vm267 = vcmask 1039360
      %v268 = vsel %vm267, %v260, %v262
      %v269 = vsel %vm267, %v262, %v264
      %v270 = vsel %vm267, %v264, %v266
      %274 = vst [vmem:[#allocation2] sm:$0xf0] %v268
      %275 = vst [vmem:[#allocation2 + $0x8] sm:$0xf0] %v269
      %276 = vst [vmem:[#allocation2 + $0x10] sm:$0xf0] %v270
      %v277 = vld [vmem:[%s234] sm:$0xff]
      %v278 = vld [vmem:[%s234 + $0x8] sm:$0xff]
      %v281 = vcombine.high %v277, %v277
      %v282 = vcombine.high %v278, %v278
      %283 = vrot.lane.b32.xlu0 %v277, 126
      %v284 = vpop.permute.xlu0 %283
      %285 = vrot.lane.b32.xlu0 %v281, 126
      %v286 = vpop.permute.xlu0 %285
      %287 = vrot.lane.b32.xlu0 %v278, 126
      %v288 = vpop.permute.xlu0 %287
      %289 = vrot.lane.b32.xlu0 %v282, 126
      %v290 = vpop.permute.xlu0 %289
      %vm291 = vcmask 1031168
      %v292 = vsel %vm291, %v284, %v286
      %v293 = vsel %vm291, %v286, %v288
      %v294 = vsel %vm291, %v288, %v290
      %298 = vst [vmem:[#allocation2 + $0x18] sm:$0xf] %v292
      %299 = vst [vmem:[#allocation2 + $0x20] sm:$0xf] %v293
      %300 = vst [vmem:[#allocation2 + $0x28] sm:$0xf] %v294
      %v301 = vld [vmem:[%s234] sm:$0xff]
      %v302 = vld [vmem:[%s234 + $0x8] sm:$0xff]
      %v305 = vcombine.low %v301, %v301
      %v306 = vcombine.low %v302, %v302
      %307 = vrot.lane.b32.xlu0 %v305, 110
      %v308 = vpop.permute.xlu0 %307
      %309 = vrot.lane.b32.xlu0 %v301, 110
      %v310 = vpop.permute.xlu0 %309
      %311 = vrot.lane.b32.xlu0 %v306, 110
      %v312 = vpop.permute.xlu0 %311
      %313 = vrot.lane.b32.xlu0 %v302, 110
      %v314 = vpop.permute.xlu0 %313
      %vm315 = vcmask 900096
      %v316 = vsel %vm315, %v308, %v310
      %v317 = vsel %vm315, %v310, %v312
      %v318 = vsel %vm315, %v312, %v314
      %322 = vst [vmem:[#allocation2 + $0x18] sm:$0xf0] %v316
      %323 = vst [vmem:[#allocation2 + $0x20] sm:$0xf0] %v317
      %324 = vst [vmem:[#allocation2 + $0x28] sm:$0xf0] %v318
      %v325 = vld [vmem:[%s234] sm:$0xff]
      %v326 = vld [vmem:[%s234 + $0x8] sm:$0xff]
      %v329 = vcombine.high %v325, %v325
      %v330 = vcombine.high %v326, %v326
      %331 = vrot.lane.b32.xlu0 %v325, 109
      %v332 = vpop.permute.xlu0 %331
      %333 = vrot.lane.b32.xlu0 %v329, 109
      %v334 = vpop.permute.xlu0 %333
      %335 = vrot.lane.b32.xlu0 %v326, 109
      %v336 = vpop.permute.xlu0 %335
      %337 = vrot.lane.b32.xlu0 %v330, 109
      %v338 = vpop.permute.xlu0 %337
      %vm339 = vcmask 891904
      %v340 = vsel %vm339, %v332, %v334
      %v341 = vsel %vm339, %v334, %v336
      %v342 = vsel %vm339, %v336, %v338
      %346 = vst [vmem:[#allocation2 + $0x30] sm:$0xf] %v340
      %347 = vst [vmem:[#allocation2 + $0x38] sm:$0xf] %v341
      %348 = vst [vmem:[#allocation2 + $0x40] sm:$0xf] %v342
      %v349 = vld [vmem:[%s234] sm:$0xff]
      %v350 = vld [vmem:[%s234 + $0x8] sm:$0xff]
      %v353 = vcombine.low %v349, %v349
      %v354 = vcombine.low %v350, %v350
      %355 = vrot.lane.b32.xlu0 %v353, 108
      %v356 = vpop.permute.xlu0 %355
      %357 = vrot.lane.b32.xlu0 %v349, 108
      %v358 = vpop.permute.xlu0 %357
      %359 = vrot.lane.b32.xlu0 %v354, 108
      %v360 = vpop.permute.xlu0 %359
      %361 = vrot.lane.b32.xlu0 %v350, 108
      %v362 = vpop.permute.xlu0 %361
      %vm363 = vcmask 883712
      %v364 = vsel %vm363, %v356, %v358
      %v365 = vsel %vm363, %v358, %v360
      %v366 = vsel %vm363, %v360, %v362
      %370 = vst [vmem:[#allocation2 + $0x30] sm:$0xf0] %v364
      %371 = vst [vmem:[#allocation2 + $0x38] sm:$0xf0] %v365
      %372 = vst [vmem:[#allocation2 + $0x40] sm:$0xf0] %v366
      %v373 = vld [vmem:[%s234] sm:$0xff]
      %v374 = vld [vmem:[%s234 + $0x8] sm:$0xff]
      %v377 = vcombine.high %v373, %v373
      %v378 = vcombine.high %v374, %v374
      %379 = vrot.lane.b32.xlu0 %v373, 92
      %v380 = vpop.permute.xlu0 %379
      %381 = vrot.lane.b32.xlu0 %v377, 92
      %v382 = vpop.permute.xlu0 %381
      %383 = vrot.lane.b32.xlu0 %v374, 92
      %v384 = vpop.permute.xlu0 %383
      %385 = vrot.lane.b32.xlu0 %v378, 92
      %v386 = vpop.permute.xlu0 %385
      %vm387 = vcmask 752640
      %v388 = vsel %vm387, %v380, %v382
      %v389 = vsel %vm387, %v382, %v384
      %v390 = vsel %vm387, %v384, %v386
      %394 = vst [vmem:[#allocation2 + $0x48] sm:$0xf] %v388
      %395 = vst [vmem:[#allocation2 + $0x50] sm:$0xf] %v389
      %396 = vst [vmem:[#allocation2 + $0x58] sm:$0xf] %v390
      %v397 = vld [vmem:[%s234] sm:$0xff]
      %v398 = vld [vmem:[%s234 + $0x8] sm:$0xff]
      %v401 = vcombine.low %v397, %v397
      %v402 = vcombine.low %v398, %v398
      %403 = vrot.lane.b32.xlu0 %v401, 91
      %v404 = vpop.permute.xlu0 %403
      %405 = vrot.lane.b32.xlu0 %v397, 91
      %v406 = vpop.permute.xlu0 %405
      %407 = vrot.lane.b32.xlu0 %v402, 91
      %v408 = vpop.permute.xlu0 %407
      %409 = vrot.lane.b32.xlu0 %v398, 91
      %v410 = vpop.permute.xlu0 %409
      %vm411 = vcmask 744448
      %v412 = vsel %vm411, %v404, %v406
      %v413 = vsel %vm411, %v406, %v408
      %v414 = vsel %vm411, %v408, %v410
      %418 = vst [vmem:[#allocation2 + $0x48] sm:$0xf0] %v412
      %419 = vst [vmem:[#allocation2 + $0x50] sm:$0xf0] %v413
      %420 = vst [vmem:[#allocation2 + $0x58] sm:$0xf0] %v414
      %v421 = vld [vmem:[%s234] sm:$0xff]
      %v422 = vld [vmem:[%s234 + $0x8] sm:$0xff]
      %v425 = vcombine.high %v421, %v421
      %v426 = vcombine.high %v422, %v422
      %427 = vrot.lane.b32.xlu0 %v421, 90
      %v428 = vpop.permute.xlu0 %427
      %429 = vrot.lane.b32.xlu0 %v425, 90
      %v430 = vpop.permute.xlu0 %429
      %431 = vrot.lane.b32.xlu0 %v422, 90
      %v432 = vpop.permute.xlu0 %431
      %433 = vrot.lane.b32.xlu0 %v426, 90
      %v434 = vpop.permute.xlu0 %433
      %vm435 = vcmask 736256
      %v436 = vsel %vm435, %v428, %v430
      %v437 = vsel %vm435, %v430, %v432
      %v438 = vsel %vm435, %v432, %v434
      %442 = vst [vmem:[#allocation2 + $0x60] sm:$0xf] %v436
      %443 = vst [vmem:[#allocation2 + $0x68] sm:$0xf] %v437
      %444 = vst [vmem:[#allocation2 + $0x70] sm:$0xf] %v438
      %v445 = vld [vmem:[%s239] sm:$0xff]
      %v446 = vld [vmem:[%s239 + $0x8] sm:$0xf]
      %v449 = vcombine.low %v445, %v445
      %v450 = vcombine.low %v446, %v446
      %453 = vst [vmem:[#allocation2 + $0x60] sm:$0xf0] %v449
      %454 = vst [vmem:[#allocation2 + $0x68] sm:$0xf0] %v445
      %455 = vst [vmem:[#allocation2 + $0x70] sm:$0xf0] %v450
      %v456 = vld [vmem:[%s239] sm:$0xff]
      %v457 = vld [vmem:[%s239 + $0x8] sm:$0xff]
      %v460 = vcombine.high %v456, %v456
      %v461 = vcombine.high %v457, %v457
      %462 = vrot.lane.b32.xlu0 %v456, 127
      %v463 = vpop.permute.xlu0 %462
      %464 = vrot.lane.b32.xlu0 %v460, 127
      %v465 = vpop.permute.xlu0 %464
      %466 = vrot.lane.b32.xlu0 %v457, 127
      %v467 = vpop.permute.xlu0 %466
      %468 = vrot.lane.b32.xlu0 %v461, 127
      %v469 = vpop.permute.xlu0 %468
      %v470 = vsel %vm267, %v463, %v465
      %v471 = vsel %vm267, %v465, %v467
      %v472 = vsel %vm267, %v467, %v469
      %476 = vst [vmem:[#allocation2 + $0x78] sm:$0xf] %v470
      %477 = vst [vmem:[#allocation2 + $0x80] sm:$0xf] %v471
      %478 = vst [vmem:[#allocation2 + $0x88] sm:$0xf] %v472
      %v479 = vld [vmem:[%s239] sm:$0xff]
      %v480 = vld [vmem:[%s239 + $0x8] sm:$0xff]
      %v483 = vcombine.low %v479, %v479
      %v484 = vcombine.low %v480, %v480
      %485 = vrot.lane.b32.xlu0 %v483, 126
      %v486 = vpop.permute.xlu0 %485
      %487 = vrot.lane.b32.xlu0 %v479, 126
      %v488 = vpop.permute.xlu0 %487
      %489 = vrot.lane.b32.xlu0 %v484, 126
      %v490 = vpop.permute.xlu0 %489
      %491 = vrot.lane.b32.xlu0 %v480, 126
      %v492 = vpop.permute.xlu0 %491
      %v493 = vsel %vm291, %v486, %v488
      %v494 = vsel %vm291, %v488, %v490
      %v495 = vsel %vm291, %v490, %v492
      %499 = vst [vmem:[#allocation2 + $0x78] sm:$0xf0] %v493
      %500 = vst [vmem:[#allocation2 + $0x80] sm:$0xf0] %v494
      %501 = vst [vmem:[#allocation2 + $0x88] sm:$0xf0] %v495
      %v502 = vld [vmem:[%s239] sm:$0xff]
      %v503 = vld [vmem:[%s239 + $0x8] sm:$0xff]
      %v506 = vcombine.high %v502, %v502
      %v507 = vcombine.high %v503, %v503
      %508 = vrot.lane.b32.xlu0 %v502, 110
      %v509 = vpop.permute.xlu0 %508
      %510 = vrot.lane.b32.xlu0 %v506, 110
      %v511 = vpop.permute.xlu0 %510
      %512 = vrot.lane.b32.xlu0 %v503, 110
      %v513 = vpop.permute.xlu0 %512
      %514 = vrot.lane.b32.xlu0 %v507, 110
      %v515 = vpop.permute.xlu0 %514
      %v516 = vsel %vm315, %v509, %v511
      %v517 = vsel %vm315, %v511, %v513
      %v518 = vsel %vm315, %v513, %v515
      %522 = vst [vmem:[#allocation2 + $0x90] sm:$0xf] %v516
      %523 = vst [vmem:[#allocation2 + $0x98] sm:$0xf] %v517
      %524 = vst [vmem:[#allocation2 + $0xa0] sm:$0xf] %v518
      %v525 = vld [vmem:[%s239] sm:$0xff]
      %v526 = vld [vmem:[%s239 + $0x8] sm:$0xff]
      %v529 = vcombine.low %v525, %v525
      %v530 = vcombine.low %v526, %v526
      %531 = vrot.lane.b32.xlu0 %v529, 109
      %v532 = vpop.permute.xlu0 %531
      %533 = vrot.lane.b32.xlu0 %v525, 109
      %v534 = vpop.permute.xlu0 %533
      %535 = vrot.lane.b32.xlu0 %v530, 109
      %v536 = vpop.permute.xlu0 %535
      %537 = vrot.lane.b32.xlu0 %v526, 109
      %v538 = vpop.permute.xlu0 %537
      %v539 = vsel %vm339, %v532, %v534
      %v540 = vsel %vm339, %v534, %v536
      %v541 = vsel %vm339, %v536, %v538
      %545 = vst [vmem:[#allocation2 + $0x90] sm:$0xf0] %v539
      %546 = vst [vmem:[#allocation2 + $0x98] sm:$0xf0] %v540
      %547 = vst [vmem:[#allocation2 + $0xa0] sm:$0xf0] %v541
      %v548 = vld [vmem:[%s239] sm:$0xff]
      %v549 = vld [vmem:[%s239 + $0x8] sm:$0xff]
      %v552 = vcombine.high %v548, %v548
      %v553 = vcombine.high %v549, %v549
      %554 = vrot.lane.b32.xlu0 %v548, 108
      %v555 = vpop.permute.xlu0 %554
      %556 = vrot.lane.b32.xlu0 %v552, 108
      %v557 = vpop.permute.xlu0 %556
      %558 = vrot.lane.b32.xlu0 %v549, 108
      %v559 = vpop.permute.xlu0 %558
      %560 = vrot.lane.b32.xlu0 %v553, 108
      %v561 = vpop.permute.xlu0 %560
      %v562 = vsel %vm363, %v555, %v557
      %v563 = vsel %vm363, %v557, %v559
      %v564 = vsel %vm363, %v559, %v561
      %568 = vst [vmem:[#allocation2 + $0xa8] sm:$0xf] %v562
      %569 = vst [vmem:[#allocation2 + $0xb0] sm:$0xf] %v563
      %570 = vst [vmem:[#allocation2 + $0xb8] sm:$0xf] %v564
      %v571 = vld [vmem:[%s239] sm:$0xff]
      %v572 = vld [vmem:[%s239 + $0x8] sm:$0xff]
      %v575 = vcombine.low %v571, %v571
      %v576 = vcombine.low %v572, %v572
      %577 = vrot.lane.b32.xlu0 %v575, 92
      %v578 = vpop.permute.xlu0 %577
      %579 = vrot.lane.b32.xlu0 %v571, 92
      %v580 = vpop.permute.xlu0 %579
      %581 = vrot.lane.b32.xlu0 %v576, 92
      %v582 = vpop.permute.xlu0 %581
      %583 = vrot.lane.b32.xlu0 %v572, 92
      %v584 = vpop.permute.xlu0 %583
      %v585 = vsel %vm387, %v578, %v580
      %v586 = vsel %vm387, %v580, %v582
      %v587 = vsel %vm387, %v582, %v584
      %591 = vst [vmem:[#allocation2 + $0xa8] sm:$0xf0] %v585
      %592 = vst [vmem:[#allocation2 + $0xb0] sm:$0xf0] %v586
      %593 = vst [vmem:[#allocation2 + $0xb8] sm:$0xf0] %v587
      %v594 = vld [vmem:[%s239] sm:$0xff]
      %v595 = vld [vmem:[%s239 + $0x8] sm:$0xff]
      %v598 = vcombine.high %v594, %v594
      %v599 = vcombine.high %v595, %v595
      %600 = vrot.lane.b32.xlu0 %v594, 91
      %v601 = vpop.permute.xlu0 %600
      %602 = vrot.lane.b32.xlu0 %v598, 91
      %v603 = vpop.permute.xlu0 %602
      %604 = vrot.lane.b32.xlu0 %v595, 91
      %v605 = vpop.permute.xlu0 %604
      %606 = vrot.lane.b32.xlu0 %v599, 91
      %v607 = vpop.permute.xlu0 %606
      %v608 = vsel %vm411, %v601, %v603
      %v609 = vsel %vm411, %v603, %v605
      %v610 = vsel %vm411, %v605, %v607
      %614 = vst [vmem:[#allocation2 + $0xc0] sm:$0xf] %v608
      %615 = vst [vmem:[#allocation2 + $0xc8] sm:$0xf] %v609
      %616 = vst [vmem:[#allocation2 + $0xd0] sm:$0xf] %v610
      %v617 = vld [vmem:[%s239] sm:$0xff]
      %v618 = vld [vmem:[%s239 + $0x8] sm:$0xff]
      %v621 = vcombine.low %v617, %v617
      %v622 = vcombine.low %v618, %v618
      %623 = vrot.lane.b32.xlu0 %v621, 90
      %v624 = vpop.permute.xlu0 %623
      %625 = vrot.lane.b32.xlu0 %v617, 90
      %v626 = vpop.permute.xlu0 %625
      %627 = vrot.lane.b32.xlu0 %v622, 90
      %v628 = vpop.permute.xlu0 %627
      %629 = vrot.lane.b32.xlu0 %v618, 90
      %v630 = vpop.permute.xlu0 %629
      %v631 = vsel %vm435, %v624, %v626
      %v632 = vsel %vm435, %v626, %v628
      %v633 = vsel %vm435, %v628, %v630
      %637 = vst [vmem:[#allocation2 + $0xc0] sm:$0xf0] %v631
      %638 = vst [vmem:[#allocation2 + $0xc8] sm:$0xf0] %v632
      %639 = vst [vmem:[#allocation2 + $0xd0] sm:$0xf0] %v633
      %v640 = vld [vmem:[%s2] sm:$0xff]
      %v641 = vld [vmem:[#allocation2] sm:$0xff]
      %v642 = vld [vmem:[#allocation2 + $0x8] sm:$0xff]
      %v643 = vld [vmem:[#allocation2 + $0x10] sm:$0xff]
      %v644 = vld [vmem:[#allocation2 + $0x18] sm:$0xff]
      %v645 = vld [vmem:[#allocation2 + $0x20] sm:$0xff]
      %v646 = vld [vmem:[#allocation2 + $0x28] sm:$0xff]
      %v647 = vld [vmem:[#allocation2 + $0x30] sm:$0xff]
      %v648 = vld [vmem:[#allocation2 + $0x38] sm:$0xff]
      %v649 = vld [vmem:[#allocation2 + $0x40] sm:$0xff]
      %v650 = vld [vmem:[#allocation2 + $0x48] sm:$0xff]
      %v651 = vld [vmem:[#allocation2 + $0x50] sm:$0xff]
      %v652 = vld [vmem:[#allocation2 + $0x58] sm:$0xff]
      %v653 = vld [vmem:[#allocation2 + $0x60] sm:$0xff]
      %v654 = vld [vmem:[#allocation2 + $0x68] sm:$0xff]
      %v655 = vld [vmem:[#allocation2 + $0x70] sm:$0xff]
      %v656 = vld [vmem:[#allocation2 + $0x78] sm:$0xff]
      %v657 = vld [vmem:[#allocation2 + $0x80] sm:$0xff]
      %v658 = vld [vmem:[#allocation2 + $0x88] sm:$0xff]
      %v659 = vld [vmem:[#allocation2 + $0x90] sm:$0xff]
      %v660 = vld [vmem:[#allocation2 + $0x98] sm:$0xff]
      %v661 = vld [vmem:[#allocation2 + $0xa0] sm:$0xff]
      %v662 = vld [vmem:[#allocation2 + $0xa8] sm:$0xff]
      %v663 = vld [vmem:[#allocation2 + $0xb0] sm:$0xff]
      %v664 = vld [vmem:[#allocation2 + $0xb8] sm:$0xff]
      %v665 = vld [vmem:[#allocation2 + $0xc0] sm:$0xff]
      %v666 = vld [vmem:[#allocation2 + $0xc8] sm:$0xff]
      %v667 = vld [vmem:[#allocation2 + $0xd0] sm:$0xff]
      %vm668 = vcmask 588800
      %v670 = vsel %vm668, %v640, 0
      %672 = vmatprep.subr.mxu0 %v642
      %673 = vmatpush1.msra.mxu0 %v641
      %674 = vmatprep.subr.mxu0 %v645
      %675 = vmatpush1.msra.mxu0 %v644
      %676 = vmatprep.subr.mxu0 %v648
      %677 = vmatpush1.msra.mxu0 %v647
      %678 = vmatprep.subr.mxu0 %v651
      %679 = vmatpush1.msra.mxu0 %v650
      %680 = vmatprep.subr.mxu0 %v654
      %681 = vmatpush1.msra.mxu0 %v653
      %682 = vmatprep.subr.mxu0 %v657
      %683 = vmatpush1.msra.mxu0 %v656
      %684 = vmatprep.subr.mxu0 %v660
      %685 = vmatpush1.msra.mxu0 %v659
      %686 = vmatprep.subr.mxu0 %v663
      %687 = vmatpush1.msra.mxu0 %v662
      %688 = vmatprep.subr.mxu0 %v666
      %689 = vmatpush1.msra.mxu0 %v665
      %690 = vmatprep.subr.mxu0 0.0
      %691 = vmatpush1.msra.mxu0 0.0
      %692 = vmatprep.subr.mxu0 0.0
      %693 = vmatpush1.msra.mxu0 0.0
      %694 = vmatprep.subr.mxu0 0.0
      %695 = vmatpush1.msra.mxu0 0.0
      %696 = vmatprep.subr.mxu0 0.0
      %697 = vmatpush1.msra.mxu0 0.0
      %698 = vmatprep.subr.mxu0 0.0
      %699 = vmatpush1.msra.mxu0 0.0
      %700 = vmatprep.subr.mxu0 0.0
      %701 = vmatpush1.msra.mxu0 0.0
      %702 = vmatprep.subr.mxu0 0.0
      %703 = vmatpush1.msra.mxu0 0.0
      %704 = vmatprep.subr.mxu0 0.0
      %705 = vmatpush1.msra.mxu0 0.0
      %706 = vmatprep.subr.mxu0 0.0
      %707 = vmatpush1.msra.mxu0 0.0
      %708 = vmatprep.subr.mxu0 0.0
      %709 = vmatpush1.msra.mxu0 0.0
      %710 = vmatprep.subr.mxu0 0.0
      %711 = vmatpush1.msra.mxu0 0.0
      %712 = vmatprep.subr.mxu0 0.0
      %713 = vmatpush1.msra.mxu0 0.0
      %714 = vmatprep.subr.mxu0 0.0
      %715 = vmatpush1.msra.mxu0 0.0
      %716 = vmatprep.subr.mxu0 0.0
      %717 = vmatpush1.msra.mxu0 0.0
      %718 = vmatprep.subr.mxu0 0.0
      %719 = vmatpush1.msra.mxu0 0.0
      %720 = vmatprep.subr.mxu0 0.0
      %721 = vmatpush1.msra.mxu0 0.0
      %722 = vmatprep.subr.mxu0 0.0
      %723 = vmatpush1.msra.mxu0 0.0
      %724 = vmatprep.subr.mxu0 0.0
      %725 = vmatpush1.msra.mxu0 0.0
      %726 = vmatprep.subr.mxu0 0.0
      %727 = vmatpush1.msra.mxu0 0.0
      %728 = vmatprep.subr.mxu0 0.0
      %729 = vmatpush1.msra.mxu0 0.0
      %730 = vmatprep.subr.mxu0 0.0
      %731 = vmatpush1.msra.mxu0 0.0
      %732 = vmatprep.subr.mxu0 0.0
      %733 = vmatpush1.msra.mxu0 0.0
      %734 = vmatprep.subr.mxu0 0.0
      %735 = vmatpush1.msra.mxu0 0.0
      %736 = vmatprep.mubr.f32.mxu0 0.0
      %737 = vmatmul.mubr.f32.gmra.mrb[0].mxu0 %v670
      %v738 = vpop.f32.mrb[0].mxu0
      %v739 = vadd.f32 0.0, %v738
      %v740 = vpop.f32.mrb[0].mxu0
      %v741 = vadd.f32 0.0, %v740
      %742 = vdwg.mxu0
      %743 = vmatprep.subr.mxu0 0.0
      %744 = vmatpush1.msra.mxu0 %v643
      %745 = vmatprep.subr.mxu0 0.0
      %746 = vmatpush1.msra.mxu0 %v646
      %747 = vmatprep.subr.mxu0 0.0
      %748 = vmatpush1.msra.mxu0 %v649
      %749 = vmatprep.subr.mxu0 0.0
      %750 = vmatpush1.msra.mxu0 %v652
      %751 = vmatprep.subr.mxu0 0.0
      %752 = vmatpush1.msra.mxu0 %v655
      %753 = vmatprep.subr.mxu0 0.0
      %754 = vmatpush1.msra.mxu0 %v658
      %755 = vmatprep.subr.mxu0 0.0
      %756 = vmatpush1.msra.mxu0 %v661
      %757 = vmatprep.subr.mxu0 0.0
      %758 = vmatpush1.msra.mxu0 %v664
      %759 = vmatprep.subr.mxu0 0.0
      %760 = vmatpush1.msra.mxu0 %v667
      %761 = vmatprep.subr.mxu0 0.0
      %762 = vmatpush1.msra.mxu0 0.0
      %763 = vmatprep.subr.mxu0 0.0
      %764 = vmatpush1.msra.mxu0 0.0
      %765 = vmatprep.subr.mxu0 0.0
      %766 = vmatpush1.msra.mxu0 0.0
      %767 = vmatprep.subr.mxu0 0.0
      %768 = vmatpush1.msra.mxu0 0.0
      %769 = vmatprep.subr.mxu0 0.0
      %770 = vmatpush1.msra.mxu0 0.0
      %771 = vmatprep.subr.mxu0 0.0
      %772 = vmatpush1.msra.mxu0 0.0
      %773 = vmatprep.subr.mxu0 0.0
      %774 = vmatpush1.msra.mxu0 0.0
      %775 = vmatprep.subr.mxu0 0.0
      %776 = vmatpush1.msra.mxu0 0.0
      %777 = vmatprep.subr.mxu0 0.0
      %778 = vmatpush1.msra.mxu0 0.0
      %779 = vmatprep.subr.mxu0 0.0
      %780 = vmatpush1.msra.mxu0 0.0
      %781 = vmatprep.subr.mxu0 0.0
      %782 = vmatpush1.msra.mxu0 0.0
      %783 = vmatprep.subr.mxu0 0.0
      %784 = vmatpush1.msra.mxu0 0.0
      %785 = vmatprep.subr.mxu0 0.0
      %786 = vmatpush1.msra.mxu0 0.0
      %787 = vmatprep.subr.mxu0 0.0
      %788 = vmatpush1.msra.mxu0 0.0
      %789 = vmatprep.subr.mxu0 0.0
      %790 = vmatpush1.msra.mxu0 0.0
      %791 = vmatprep.subr.mxu0 0.0
      %792 = vmatpush1.msra.mxu0 0.0
      %793 = vmatprep.subr.mxu0 0.0
      %794 = vmatpush1.msra.mxu0 0.0
      %795 = vmatprep.subr.mxu0 0.0
      %796 = vmatpush1.msra.mxu0 0.0
      %797 = vmatprep.subr.mxu0 0.0
      %798 = vmatpush1.msra.mxu0 0.0
      %799 = vmatprep.subr.mxu0 0.0
      %800 = vmatpush1.msra.mxu0 0.0
      %801 = vmatprep.subr.mxu0 0.0
      %802 = vmatpush1.msra.mxu0 0.0
      %803 = vmatprep.subr.mxu0 0.0
      %804 = vmatpush1.msra.mxu0 0.0
      %805 = vmatprep.subr.mxu0 0.0
      %806 = vmatpush1.msra.mxu0 0.0
      %807 = vmatprep.mubr.f32.mxu0 0.0
      %808 = vmatmul.mubr.f32.gmra.mrb[0].mxu0 %v670
      %v809 = vpop.f32.mrb[0].mxu0
      %v810 = vadd.f32 0.0, %v809
      %v811 = vpop.f32.mrb[0].mxu0
      %812 = vdwg.mxu0
      %v813 = vld [vmem:[%s3] sm:$0xff]
      %815 = vset.pattern.permute.xlu0 0
      %816 = vperm.xlu0 %815, %v813
      %v817 = vpop.permute.xlu0 %816
      %v819 = vmul.f32 %v739, %v817
      %v820 = vmul.f32 %v741, %v817
      %v821 = vmul.f32 %v810, %v817
      %v822 = vld [vmem:[%s4] sm:$0xff]
      %824 = vset.pattern.permute.xlu0 0
      %825 = vperm.xlu0 %824, %v822
      %v826 = vpop.permute.xlu0 %825
      %v828 = vadd.f32 %v819, %v826
      %v829 = vadd.f32 %v820, %v826
      %v830 = vadd.f32 %v821, %v826
      %vm831 = vcmp.ge.f32.partialorder %v828, 0.0
      %vm832 = vcmp.ge.f32.partialorder %v829, 0.0
      %vm833 = vcmp.ge.f32.partialorder %v830, 0.0
      %v834 = vmul.f32 %v828, 0.01
      %v835 = vmul.f32 %v829, 0.01
      %v836 = vmul.f32 %v830, 0.01
      %v837 = vsel %vm831, %v828, %v834
      %v838 = vsel %vm832, %v829, %v835
      %v839 = vsel %vm833, %v830, %v836
      %840 = vst [vmem:[%s244] sm:$0xff] %v837
      %841 = vst [vmem:[%s244 + $0x8] sm:$0xff] %v838
      %842 = vst [vmem:[%s244 + $0x10] sm:$0xff] %v839
      %p843 = scmp.lt.s32.totalorder %s16, 1
      %s844 = scalar_select %p843, %s16, 1
      %s845 = smul.addr %s844, 3
      %s846 = smul.addr %s845, 8
      %s847 = scalar_lea.vmem %s5, %s846
      // Predicated region
      $region41: #{fpn_layer_forward.3} parent=39 // pred_check
        %p848 = pneg %p149
      $region42: #{fpn_layer_forward.3} parent=39 // pred_check_branch
        %850 = sbr.rel (%p848) target = $region44
      $region43: #{fpn_layer_forward.3} parent=39 // pred_region
        _
      $region44: #{fpn_layer_forward.3} parent=39 // pred_fallthru
        _
    $region40: #{fpn_layer_forward.3} parent=5 // pred_fallthru
      _
    %p851 = scmp.le.s32.totalorder 2, %s11
    // Predicated region
    $region45: #{fpn_layer_forward.3} parent=5 // pred_check
      %p852 = pneg %p851
    $region46: #{fpn_layer_forward.3} parent=5 // pred_check_branch
      %854 = sbr.rel (%p852) target = $region48
    $region47: #{fpn_layer_forward.3} parent=5 // pred_region
      %s855 = ssub.s32 %s11, 2
      // Predicated region
      $region49: #{fpn_layer_forward.3} parent=47 // pred_check
        %p856 = pneg %p155
      $region50: #{fpn_layer_forward.3} parent=47 // pred_check_branch
        %858 = sbr.rel (%p856) target = $region52
      $region51: #{fpn_layer_forward.3} parent=47 // pred_region
        %p859 = scmp.lt.s32.totalorder %s17, 1
        %s860 = scalar_select %p859, %s17, 1
        %s861 = smul.addr %s860, 3
        %s862 = smul.addr %s861, 8
        %s863 = scalar_lea.vmem %s5, %s862
      $region52: #{fpn_layer_forward.3} parent=47 // pred_fallthru
        _
    $region48: #{fpn_layer_forward.3} parent=5 // pred_fallthru
      _
  $region6: #{fpn_layer_forward.3} parent=0 // loop_footer
    %s15 = sadd.s32 1, %s11
  $region7: #{fpn_layer_forward.3} parent=0 // loop_footer_branch
    %10 = sbr.rel target = $region3
  $region8: #{fpn_layer_forward.3} parent=0 // loop_exit
    _

</llo_original>
